<compile_context>
chip_gen: v7x
topology: tpu7x:2x2x1
jax: 0.10.0
libtpu: 0.0.40
codegen_flags: <defaults>
</compile_context>

<pallas_src>
import numpy as np

import jax
import jax.numpy as jnp
from jax.experimental import pallas as pl
from jax.experimental.pallas import tpu as pltpu


# ------------------------------ model config --------------------------------
def calc_conv_length_out(l, cont, c_pad=1, dil=1, k_size=3, c_stride=1):
    # Faithful replica of conv_attention.calc_conv_length_out
    if cont > 0:
        l = min(l, calc_conv_length_out(
            int(1 + (l + 2 * c_pad - dil * (k_size - 1) - 1) / c_stride),
            cont - 1, c_pad=c_pad, dil=dil, k_size=k_size, c_stride=c_stride))
    return l


BATCH = 2
CHANNEL_DIM = 4                  # channel_shape
INPUT_SHAPE = (16, 4)            # shape_signal -> output reshaped to (B, 16, 4)
KERNEL_SIZE = 3
SIGNAL_LEN = INPUT_SHAPE[0]      # conv time length T
CH = 12                          # conv hidden channels
DTYPE = jnp.float32

FINAL_OUT_CNN = calc_conv_length_out(SIGNAL_LEN, 3, c_pad=1, dil=1,
                                     k_size=KERNEL_SIZE, c_stride=1)
assert FINAL_OUT_CNN == SIGNAL_LEN          # true for k=3, s=1, p=1
FC_IN = CH * FINAL_OUT_CNN                  # 192
OUT_PROD = INPUT_SHAPE[0] * INPUT_SHAPE[1]  # 64
S0, S1 = INPUT_SHAPE                        # softmax over the S0 axis (dim=1)

_VMEM = pl.BlockSpec(memory_space=pltpu.MemorySpace.VMEM)


# ------------------------------ fused kernel --------------------------------
def _shift_time(h, direction):
    """Shift a (B, T, C) value along time with zero fill, in registers.

    direction=+1: out[:, t] = h[:, t-1] (zero row at t=0)    -> conv tap k=0
    direction=-1: out[:, t] = h[:, t+1] (zero row at t=T-1)  -> conv tap k=2
    Pure value ops (static slice + concat): no scratch, no stores.
    """
    b, t, c = h.shape
    zero_row = jnp.zeros((b, 1, c), h.dtype)
    if direction > 0:
        return jnp.concatenate([zero_row, h[:, :t - 1, :]], axis=1)
    return jnp.concatenate([h[:, 1:, :], zero_row], axis=1)


def _conv_lrelu(h, w_ref, b_ref):
    """Conv1d(k=3, s=1, p=1) + LeakyReLU(0.1) on a (B, T, Cin) value.

    w_ref: (3, Cin, Cout) per-tap weights; b_ref: (1, Cout).
    Three accumulating MXU matmuls replace the former im2col scratch slab.
    """
    b, t, c = h.shape
    cout = w_ref.shape[2]
    prev = _shift_time(h, +1).reshape(b * t, c)      # x[t-1]
    cur = h.reshape(b * t, c)                        # x[t]
    nxt = _shift_time(h, -1).reshape(b * t, c)       # x[t+1]
    y = jnp.dot(prev, w_ref[0], preferred_element_type=jnp.float32)
    y = y + jnp.dot(cur, w_ref[1], preferred_element_type=jnp.float32)
    y = y + jnp.dot(nxt, w_ref[2], preferred_element_type=jnp.float32)
    y = y + b_ref[...]
    y = jnp.maximum(y, 0.1 * y)                      # LeakyReLU(0.1)
    return y.reshape(b, t, cout)


def _conv_attention_kernel(x_ref, w1_ref, b1_ref, w2_ref, b2_ref, w3_ref, b3_ref,
                           fcw_ref, fcb_ref, o_ref):
    # x_ref: (B, T, C_in) channels-last.
    # o_ref: (B, OUT_PROD) lane-dense; columns are softmax-group-major
    #        (each group = S0 contiguous lanes).
    B, T, _ = x_ref.shape

    h = x_ref[...].astype(jnp.float32)
    h = _conv_lrelu(h, w1_ref, b1_ref)               # (B, T, 12)
    h = _conv_lrelu(h, w2_ref, b2_ref)               # (B, T, 12)
    h = _conv_lrelu(h, w3_ref, b3_ref)               # (B, T, 12)

    # Final Linear as per-timestep MXU accumulation (fcw folded to
    # (T, CH, OUT_PROD)); replaces the flatten-to-scratch loop entirely.
    z = fcb_ref[...]                                 # (1, OUT_PROD), added once
    for t in range(T):                               # unrolled, T = 16
        z = z + jnp.dot(h[:, t, :], fcw_ref[t],
                        preferred_element_type=jnp.float32)   # (B, OUT_PROD)

    # Softmax over dim=1 of the (B, S0, S1) reshape.  fc columns were permuted
    # to group-major so every group is a contiguous S0-wide lane slice; all
    # groups are computed as values and written with ONE full-tile store.
    n_groups = OUT_PROD // S0                        # = S1
    parts = []
    for g in range(n_groups):
        zg = z[:, g * S0:(g + 1) * S0]               # (B, S0)
        m = jnp.max(zg, axis=-1, keepdims=True)
        e = jnp.exp(zg - m)
        s = jnp.sum(e, axis=-1, keepdims=True)
        parts.append(e * pl.reciprocal(s, approx=True))   # EUP reciprocal
    o_ref[...] = jnp.concatenate(parts, axis=-1).astype(o_ref.dtype)


@jax.jit
def conv_attention_forward(x, p):
    """x: (B, C_in, T) like the PyTorch module; returns (B, *INPUT_SHAPE)."""
    B, C, T = x.shape
    # NCT -> NTC (channels on lanes).  allow_input_fusion lets XLA fold this
    # tiny transpose into the pallas_call operand instead of its own launch.
    x_ntc = jnp.transpose(x, (0, 2, 1))
    z = pl.pallas_call(
        _conv_attention_kernel,
        out_shape=jax.ShapeDtypeStruct((B, OUT_PROD), DTYPE),
        in_specs=[_VMEM] * 9,
        out_specs=_VMEM,
        compiler_params=pltpu.CompilerParams(
            allow_input_fusion=[True] + [False] * 8),
    )(x_ntc, p["w1"], p["b1"], p["w2"], p["b2"], p["w3"], p["b3"],
      p["fcw"], p["fcb"])
    # Kernel columns are group-major (s1*S0 + s0): reinterpret to torch (B, S0, S1).
    return jnp.transpose(z.reshape(B, S1, S0), (0, 2, 1))


# ------------------------- parameters (torch layout) -------------------------
def init_torch_params(key):
    ks = jax.random.split(key, 8)

    def u(k, shape, fan_in):
        bound = 1.0 / np.sqrt(fan_in)
        return jax.random.uniform(k, shape, DTYPE, -bound, bound)

    p = {}
    p["w1"] = u(ks[0], (CH, CHANNEL_DIM, KERNEL_SIZE), CHANNEL_DIM * KERNEL_SIZE)
    p["b1"] = u(ks[1], (CH,), CHANNEL_DIM * KERNEL_SIZE)
    p["w2"] = u(ks[2], (CH, CH, KERNEL_SIZE), CH * KERNEL_SIZE)
    p["b2"] = u(ks[3], (CH,), CH * KERNEL_SIZE)
    p["w3"] = u(ks[4], (CH, CH, KERNEL_SIZE), CH * KERNEL_SIZE)
    p["b3"] = u(ks[5], (CH,), CH * KERNEL_SIZE)
    p["fcw"] = u(ks[6], (OUT_PROD, FC_IN), FC_IN)      # (out_features, in_features)
    p["fcb"] = u(ks[7], (OUT_PROD,), FC_IN)
    return p


def fold_params(tp):
    """Fold all layout permutations into the weights (one-time, zero runtime cost)."""
    def conv_w(wt):  # torch (Cout, Cin, K) -> (K, Cin, Cout) per-tap slices
        return jnp.transpose(wt, (2, 1, 0))

    fp = {}
    fp["w1"], fp["b1"] = conv_w(tp["w1"]), tp["b1"].reshape(1, CH)
    fp["w2"], fp["b2"] = conv_w(tp["w2"]), tp["b2"].reshape(1, CH)
    fp["w3"], fp["b3"] = conv_w(tp["w3"]), tp["b3"].reshape(1, CH)

    T = FINAL_OUT_CNN
    # torch fc consumes a channel-major flatten (row index c*T + t); regroup the
    # rows into per-timestep (T, CH, OUT_PROD) blocks for in-kernel accumulation.
    w = jnp.transpose(tp["fcw"], (1, 0))                                   # (FC_IN, OUT_PROD)
    w = w.reshape(CH, T, OUT_PROD).transpose(1, 0, 2)                      # (T, CH, OUT_PROD)
    # torch output index o = s0*S1 + s1 -> permute columns to group-major
    # (s1*S0 + s0) so each softmax group is lane-contiguous in the kernel.
    w = w.reshape(T, CH, S0, S1).transpose(0, 1, 3, 2).reshape(T, CH, OUT_PROD)
    fp["fcw"] = w
    fp["fcb"] = tp["fcb"].reshape(S0, S1).transpose(1, 0).reshape(1, OUT_PROD)
    return fp


# ------------------------- pure-JAX reference (torch semantics) --------------
def reference_forward(x, tp):
    h = x.astype(jnp.float32)                                  # (B, C, T)
    for wt, bt in ((tp["w1"], tp["b1"]), (tp["w2"], tp["b2"]), (tp["w3"], tp["b3"])):
        hp = jnp.pad(h, ((0, 0), (0, 0), (1, 1)))
        T = h.shape[2]
        y = bt[None, :, None]
        for k in range(KERNEL_SIZE):
            y = y + jnp.einsum("oi,bit->bot", wt[:, :, k], hp[:, :, k:k + T])
        h = jnp.where(y >= 0, y, 0.1 * y)                      # LeakyReLU(0.1)
    flat = h.reshape(h.shape[0], -1)                           # channel-major flatten
    z = flat @ tp["fcw"].T + tp["fcb"]
    z = z.reshape(-1, S0, S1)
    return jax.nn.softmax(z, axis=1)                           # Softmax(dim=1)


# ----------------------------------- main ------------------------------------
if __name__ == "__main__":
    root = jax.random.PRNGKey(0)
    k_x, k_p = jax.random.split(root)

    x = jax.random.normal(k_x, (BATCH, CHANNEL_DIM, SIGNAL_LEN), DTYPE)   # NCT input
    torch_params = init_torch_params(k_p)
    params = fold_params(torch_params)

    out = conv_attention_forward(x, params)
    jax.block_until_ready(out)

    assert out.shape == (BATCH, *INPUT_SHAPE)

    ref = reference_forward(x, torch_params)
    np.testing.assert_allclose(np.asarray(out), np.asarray(ref), atol=2e-3, rtol=2e-2)
    row_sums = jnp.sum(out, axis=1)          # softmax over dim=1 sums to ~1
    assert bool(jnp.all(jnp.abs(row_sums - 1.0) < 5e-3))   # approx reciprocal slack
    assert bool(jnp.all(jnp.isfinite(out)))

    print("KERNEL_OK")
</pallas_src>

<mosaic_0001>
module attributes {stable_mosaic.version = 11 : i64} {
  func.func @_conv_attention_kernel(%arg0: memref<2x16x4xf32, #tpu.memory_space<vmem>>, %arg1: memref<3x4x12xf32, #tpu.memory_space<vmem>>, %arg2: memref<1x12xf32, #tpu.memory_space<vmem>>, %arg3: memref<3x12x12xf32, #tpu.memory_space<vmem>>, %arg4: memref<1x12xf32, #tpu.memory_space<vmem>>, %arg5: memref<3x12x12xf32, #tpu.memory_space<vmem>>, %arg6: memref<1x12xf32, #tpu.memory_space<vmem>>, %arg7: memref<16x12x64xf32, #tpu.memory_space<vmem>>, %arg8: memref<1x64xf32, #tpu.memory_space<vmem>>, %arg9: memref<2x64xf32, #tpu.memory_space<vmem>>) attributes {dimension_semantics = [], scalar_prefetch = 0 : i64, scratch_operands = 0 : i64, tpu.core_type = #tpu.core_type<tc>} {
    %c0 = arith.constant 0 : index
    %c0_0 = arith.constant 0 : index
    %c0_1 = arith.constant 0 : index
    %0 = vector.load %arg0[%c0, %c0_0, %c0_1] : memref<2x16x4xf32, #tpu.memory_space<vmem>>, vector<2x16x4xf32>
    %cst = arith.constant 0.000000e+00 : f32
    %1 = vector.broadcast %cst : f32 to vector<2x1x4xf32>
    %2 = vector.extract_strided_slice %0 {offsets = [0, 0, 0], sizes = [2, 15, 4], strides = [1, 1, 1]} : vector<2x16x4xf32> to vector<2x15x4xf32>
    %3 = tpu.concatenate %1, %2 in 1 : vector<2x1x4xf32>, vector<2x15x4xf32> -> vector<2x16x4xf32>
    %4 = vector.shape_cast %3 : vector<2x16x4xf32> to vector<32x4xf32>
    %5 = vector.shape_cast %0 : vector<2x16x4xf32> to vector<32x4xf32>
    %cst_2 = arith.constant 0.000000e+00 : f32
    %6 = vector.broadcast %cst_2 : f32 to vector<2x1x4xf32>
    %7 = vector.extract_strided_slice %0 {offsets = [0, 1, 0], sizes = [2, 15, 4], strides = [1, 1, 1]} : vector<2x16x4xf32> to vector<2x15x4xf32>
    %8 = tpu.concatenate %7, %6 in 1 : vector<2x15x4xf32>, vector<2x1x4xf32> -> vector<2x16x4xf32>
    %9 = vector.shape_cast %8 : vector<2x16x4xf32> to vector<32x4xf32>
    %c0_3 = arith.constant 0 : index
    %c0_4 = arith.constant 0 : index
    %c0_5 = arith.constant 0 : index
    %10 = vector.load %arg1[%c0_3, %c0_4, %c0_5] : memref<3x4x12xf32, #tpu.memory_space<vmem>>, vector<1x4x12xf32>
    %11 = vector.shape_cast %10 : vector<1x4x12xf32> to vector<4x12xf32>
    %cst_6 = arith.constant dense<0.000000e+00> : vector<32x12xf32>
    %12 = tpu.matmul %4, %11, %cst_6 {dimension_numbers = #tpu.dot_dimension_numbers<[1], [0], [0], [1], [0, 0, 1, 1], [], []>} : vector<32x4xf32>, vector<4x12xf32>, vector<32x12xf32> -> vector<32x12xf32>
    %c1 = arith.constant 1 : index
    %c0_7 = arith.constant 0 : index
    %c0_8 = arith.constant 0 : index
    %13 = vector.load %arg1[%c1, %c0_7, %c0_8] : memref<3x4x12xf32, #tpu.memory_space<vmem>>, vector<1x4x12xf32>
    %14 = vector.shape_cast %13 : vector<1x4x12xf32> to vector<4x12xf32>
    %cst_9 = arith.constant dense<0.000000e+00> : vector<32x12xf32>
    %15 = tpu.matmul %5, %14, %cst_9 {dimension_numbers = #tpu.dot_dimension_numbers<[1], [0], [0], [1], [0, 0, 1, 1], [], []>} : vector<32x4xf32>, vector<4x12xf32>, vector<32x12xf32> -> vector<32x12xf32>
    %16 = arith.addf %12, %15 : vector<32x12xf32>
    %c2 = arith.constant 2 : index
    %c0_10 = arith.constant 0 : index
    %c0_11 = arith.constant 0 : index
    %17 = vector.load %arg1[%c2, %c0_10, %c0_11] : memref<3x4x12xf32, #tpu.memory_space<vmem>>, vector<1x4x12xf32>
    %18 = vector.shape_cast %17 : vector<1x4x12xf32> to vector<4x12xf32>
    %cst_12 = arith.constant dense<0.000000e+00> : vector<32x12xf32>
    %19 = tpu.matmul %9, %18, %cst_12 {dimension_numbers = #tpu.dot_dimension_numbers<[1], [0], [0], [1], [0, 0, 1, 1], [], []>} : vector<32x4xf32>, vector<4x12xf32>, vector<32x12xf32> -> vector<32x12xf32>
    %20 = arith.addf %16, %19 : vector<32x12xf32>
    %c0_13 = arith.constant 0 : index
    %c0_14 = arith.constant 0 : index
    %21 = vector.load %arg2[%c0_13, %c0_14] : memref<1x12xf32, #tpu.memory_space<vmem>>, vector<1x12xf32>
    %22 = vector.broadcast %21 : vector<1x12xf32> to vector<32x12xf32>
    %23 = arith.addf %20, %22 : vector<32x12xf32>
    %cst_15 = arith.constant 1.000000e-01 : f32
    %24 = vector.broadcast %cst_15 : f32 to vector<32x12xf32>
    %25 = arith.mulf %24, %23 : vector<32x12xf32>
    %26 = arith.maximumf %23, %25 : vector<32x12xf32>
    %27 = vector.shape_cast %26 : vector<32x12xf32> to vector<2x16x12xf32>
    %cst_16 = arith.constant 0.000000e+00 : f32
    %28 = vector.broadcast %cst_16 : f32 to vector<2x1x12xf32>
    %29 = vector.extract_strided_slice %27 {offsets = [0, 0, 0], sizes = [2, 15, 12], strides = [1, 1, 1]} : vector<2x16x12xf32> to vector<2x15x12xf32>
    %30 = tpu.concatenate %28, %29 in 1 : vector<2x1x12xf32>, vector<2x15x12xf32> -> vector<2x16x12xf32>
    %31 = vector.shape_cast %30 : vector<2x16x12xf32> to vector<32x12xf32>
    %32 = vector.shape_cast %27 : vector<2x16x12xf32> to vector<32x12xf32>
    %cst_17 = arith.constant 0.000000e+00 : f32
    %33 = vector.broadcast %cst_17 : f32 to vector<2x1x12xf32>
    %34 = vector.extract_strided_slice %27 {offsets = [0, 1, 0], sizes = [2, 15, 12], strides = [1, 1, 1]} : vector<2x16x12xf32> to vector<2x15x12xf32>
    %35 = tpu.concatenate %34, %33 in 1 : vector<2x15x12xf32>, vector<2x1x12xf32> -> vector<2x16x12xf32>
    %36 = vector.shape_cast %35 : vector<2x16x12xf32> to vector<32x12xf32>
    %c0_18 = arith.constant 0 : index
    %c0_19 = arith.constant 0 : index
    %c0_20 = arith.constant 0 : index
    %37 = vector.load %arg3[%c0_18, %c0_19, %c0_20] : memref<3x12x12xf32, #tpu.memory_space<vmem>>, vector<1x12x12xf32>
    %38 = vector.shape_cast %37 : vector<1x12x12xf32> to vector<12x12xf32>
    %cst_21 = arith.constant dense<0.000000e+00> : vector<32x12xf32>
    %39 = tpu.matmul %31, %38, %cst_21 {dimension_numbers = #tpu.dot_dimension_numbers<[1], [0], [0], [1], [0, 0, 1, 1], [], []>} : vector<32x12xf32>, vector<12x12xf32>, vector<32x12xf32> -> vector<32x12xf32>
    %c1_22 = arith.constant 1 : index
    %c0_23 = arith.constant 0 : index
    %c0_24 = arith.constant 0 : index
    %40 = vector.load %arg3[%c1_22, %c0_23, %c0_24] : memref<3x12x12xf32, #tpu.memory_space<vmem>>, vector<1x12x12xf32>
    %41 = vector.shape_cast %40 : vector<1x12x12xf32> to vector<12x12xf32>
    %cst_25 = arith.constant dense<0.000000e+00> : vector<32x12xf32>
    %42 = tpu.matmul %32, %41, %cst_25 {dimension_numbers = #tpu.dot_dimension_numbers<[1], [0], [0], [1], [0, 0, 1, 1], [], []>} : vector<32x12xf32>, vector<12x12xf32>, vector<32x12xf32> -> vector<32x12xf32>
    %43 = arith.addf %39, %42 : vector<32x12xf32>
    %c2_26 = arith.constant 2 : index
    %c0_27 = arith.constant 0 : index
    %c0_28 = arith.constant 0 : index
    %44 = vector.load %arg3[%c2_26, %c0_27, %c0_28] : memref<3x12x12xf32, #tpu.memory_space<vmem>>, vector<1x12x12xf32>
    %45 = vector.shape_cast %44 : vector<1x12x12xf32> to vector<12x12xf32>
    %cst_29 = arith.constant dense<0.000000e+00> : vector<32x12xf32>
    %46 = tpu.matmul %36, %45, %cst_29 {dimension_numbers = #tpu.dot_dimension_numbers<[1], [0], [0], [1], [0, 0, 1, 1], [], []>} : vector<32x12xf32>, vector<12x12xf32>, vector<32x12xf32> -> vector<32x12xf32>
    %47 = arith.addf %43, %46 : vector<32x12xf32>
    %c0_30 = arith.constant 0 : index
    %c0_31 = arith.constant 0 : index
    %48 = vector.load %arg4[%c0_30, %c0_31] : memref<1x12xf32, #tpu.memory_space<vmem>>, vector<1x12xf32>
    %49 = vector.broadcast %48 : vector<1x12xf32> to vector<32x12xf32>
    %50 = arith.addf %47, %49 : vector<32x12xf32>
    %cst_32 = arith.constant 1.000000e-01 : f32
    %51 = vector.broadcast %cst_32 : f32 to vector<32x12xf32>
    %52 = arith.mulf %51, %50 : vector<32x12xf32>
    %53 = arith.maximumf %50, %52 : vector<32x12xf32>
    %54 = vector.shape_cast %53 : vector<32x12xf32> to vector<2x16x12xf32>
    %cst_33 = arith.constant 0.000000e+00 : f32
    %55 = vector.broadcast %cst_33 : f32 to vector<2x1x12xf32>
    %56 = vector.extract_strided_slice %54 {offsets = [0, 0, 0], sizes = [2, 15, 12], strides = [1, 1, 1]} : vector<2x16x12xf32> to vector<2x15x12xf32>
    %57 = tpu.concatenate %55, %56 in 1 : vector<2x1x12xf32>, vector<2x15x12xf32> -> vector<2x16x12xf32>
    %58 = vector.shape_cast %57 : vector<2x16x12xf32> to vector<32x12xf32>
    %59 = vector.shape_cast %54 : vector<2x16x12xf32> to vector<32x12xf32>
    %cst_34 = arith.constant 0.000000e+00 : f32
    %60 = vector.broadcast %cst_34 : f32 to vector<2x1x12xf32>
    %61 = vector.extract_strided_slice %54 {offsets = [0, 1, 0], sizes = [2, 15, 12], strides = [1, 1, 1]} : vector<2x16x12xf32> to vector<2x15x12xf32>
    %62 = tpu.concatenate %61, %60 in 1 : vector<2x15x12xf32>, vector<2x1x12xf32> -> vector<2x16x12xf32>
    %63 = vector.shape_cast %62 : vector<2x16x12xf32> to vector<32x12xf32>
    %c0_35 = arith.constant 0 : index
    %c0_36 = arith.constant 0 : index
    %c0_37 = arith.constant 0 : index
    %64 = vector.load %arg5[%c0_35, %c0_36, %c0_37] : memref<3x12x12xf32, #tpu.memory_space<vmem>>, vector<1x12x12xf32>
    %65 = vector.shape_cast %64 : vector<1x12x12xf32> to vector<12x12xf32>
    %cst_38 = arith.constant dense<0.000000e+00> : vector<32x12xf32>
    %66 = tpu.matmul %58, %65, %cst_38 {dimension_numbers = #tpu.dot_dimension_numbers<[1], [0], [0], [1], [0, 0, 1, 1], [], []>} : vector<32x12xf32>, vector<12x12xf32>, vector<32x12xf32> -> vector<32x12xf32>
    %c1_39 = arith.constant 1 : index
    %c0_40 = arith.constant 0 : index
    %c0_41 = arith.constant 0 : index
    %67 = vector.load %arg5[%c1_39, %c0_40, %c0_41] : memref<3x12x12xf32, #tpu.memory_space<vmem>>, vector<1x12x12xf32>
    %68 = vector.shape_cast %67 : vector<1x12x12xf32> to vector<12x12xf32>
    %cst_42 = arith.constant dense<0.000000e+00> : vector<32x12xf32>
    %69 = tpu.matmul %59, %68, %cst_42 {dimension_numbers = #tpu.dot_dimension_numbers<[1], [0], [0], [1], [0, 0, 1, 1], [], []>} : vector<32x12xf32>, vector<12x12xf32>, vector<32x12xf32> -> vector<32x12xf32>
    %70 = arith.addf %66, %69 : vector<32x12xf32>
    %c2_43 = arith.constant 2 : index
    %c0_44 = arith.constant 0 : index
    %c0_45 = arith.constant 0 : index
    %71 = vector.load %arg5[%c2_43, %c0_44, %c0_45] : memref<3x12x12xf32, #tpu.memory_space<vmem>>, vector<1x12x12xf32>
    %72 = vector.shape_cast %71 : vector<1x12x12xf32> to vector<12x12xf32>
    %cst_46 = arith.constant dense<0.000000e+00> : vector<32x12xf32>
    %73 = tpu.matmul %63, %72, %cst_46 {dimension_numbers = #tpu.dot_dimension_numbers<[1], [0], [0], [1], [0, 0, 1, 1], [], []>} : vector<32x12xf32>, vector<12x12xf32>, vector<32x12xf32> -> vector<32x12xf32>
    %74 = arith.addf %70, %73 : vector<32x12xf32>
    %c0_47 = arith.constant 0 : index
    %c0_48 = arith.constant 0 : index
    %75 = vector.load %arg6[%c0_47, %c0_48] : memref<1x12xf32, #tpu.memory_space<vmem>>, vector<1x12xf32>
    %76 = vector.broadcast %75 : vector<1x12xf32> to vector<32x12xf32>
    %77 = arith.addf %74, %76 : vector<32x12xf32>
    %cst_49 = arith.constant 1.000000e-01 : f32
    %78 = vector.broadcast %cst_49 : f32 to vector<32x12xf32>
    %79 = arith.mulf %78, %77 : vector<32x12xf32>
    %80 = arith.maximumf %77, %79 : vector<32x12xf32>
    %81 = vector.shape_cast %80 : vector<32x12xf32> to vector<2x16x12xf32>
    %c0_50 = arith.constant 0 : index
    %c0_51 = arith.constant 0 : index
    %82 = vector.load %arg8[%c0_50, %c0_51] : memref<1x64xf32, #tpu.memory_space<vmem>>, vector<1x64xf32>
    %83 = vector.extract_strided_slice %81 {offsets = [0, 0, 0], sizes = [2, 1, 12], strides = [1, 1, 1]} : vector<2x16x12xf32> to vector<2x1x12xf32>
    %84 = vector.shape_cast %83 : vector<2x1x12xf32> to vector<2x12xf32>
    %c0_52 = arith.constant 0 : index
    %c0_53 = arith.constant 0 : index
    %c0_54 = arith.constant 0 : index
    %85 = vector.load %arg7[%c0_52, %c0_53, %c0_54] : memref<16x12x64xf32, #tpu.memory_space<vmem>>, vector<1x12x64xf32>
    %86 = vector.shape_cast %85 : vector<1x12x64xf32> to vector<12x64xf32>
    %cst_55 = arith.constant dense<0.000000e+00> : vector<2x64xf32>
    %87 = tpu.matmul %84, %86, %cst_55 {dimension_numbers = #tpu.dot_dimension_numbers<[1], [0], [0], [1], [0, 0, 1, 1], [], []>} : vector<2x12xf32>, vector<12x64xf32>, vector<2x64xf32> -> vector<2x64xf32>
    %88 = vector.broadcast %82 : vector<1x64xf32> to vector<2x64xf32>
    %89 = arith.addf %88, %87 : vector<2x64xf32>
    %90 = vector.extract_strided_slice %81 {offsets = [0, 1, 0], sizes = [2, 1, 12], strides = [1, 1, 1]} : vector<2x16x12xf32> to vector<2x1x12xf32>
    %91 = vector.shape_cast %90 : vector<2x1x12xf32> to vector<2x12xf32>
    %c1_56 = arith.constant 1 : index
    %c0_57 = arith.constant 0 : index
    %c0_58 = arith.constant 0 : index
    %92 = vector.load %arg7[%c1_56, %c0_57, %c0_58] : memref<16x12x64xf32, #tpu.memory_space<vmem>>, vector<1x12x64xf32>
    %93 = vector.shape_cast %92 : vector<1x12x64xf32> to vector<12x64xf32>
    %cst_59 = arith.constant dense<0.000000e+00> : vector<2x64xf32>
    %94 = tpu.matmul %91, %93, %cst_59 {dimension_numbers = #tpu.dot_dimension_numbers<[1], [0], [0], [1], [0, 0, 1, 1], [], []>} : vector<2x12xf32>, vector<12x64xf32>, vector<2x64xf32> -> vector<2x64xf32>
    %95 = arith.addf %89, %94 : vector<2x64xf32>
    %96 = vector.extract_strided_slice %81 {offsets = [0, 2, 0], sizes = [2, 1, 12], strides = [1, 1, 1]} : vector<2x16x12xf32> to vector<2x1x12xf32>
    %97 = vector.shape_cast %96 : vector<2x1x12xf32> to vector<2x12xf32>
    %c2_60 = arith.constant 2 : index
    %c0_61 = arith.constant 0 : index
    %c0_62 = arith.constant 0 : index
    %98 = vector.load %arg7[%c2_60, %c0_61, %c0_62] : memref<16x12x64xf32, #tpu.memory_space<vmem>>, vector<1x12x64xf32>
    %99 = vector.shape_cast %98 : vector<1x12x64xf32> to vector<12x64xf32>
    %cst_63 = arith.constant dense<0.000000e+00> : vector<2x64xf32>
    %100 = tpu.matmul %97, %99, %cst_63 {dimension_numbers = #tpu.dot_dimension_numbers<[1], [0], [0], [1], [0, 0, 1, 1], [], []>} : vector<2x12xf32>, vector<12x64xf32>, vector<2x64xf32> -> vector<2x64xf32>
    %101 = arith.addf %95, %100 : vector<2x64xf32>
    %102 = vector.extract_strided_slice %81 {offsets = [0, 3, 0], sizes = [2, 1, 12], strides = [1, 1, 1]} : vector<2x16x12xf32> to vector<2x1x12xf32>
    %103 = vector.shape_cast %102 : vector<2x1x12xf32> to vector<2x12xf32>
    %c3 = arith.constant 3 : index
    %c0_64 = arith.constant 0 : index
    %c0_65 = arith.constant 0 : index
    %104 = vector.load %arg7[%c3, %c0_64, %c0_65] : memref<16x12x64xf32, #tpu.memory_space<vmem>>, vector<1x12x64xf32>
    %105 = vector.shape_cast %104 : vector<1x12x64xf32> to vector<12x64xf32>
    %cst_66 = arith.constant dense<0.000000e+00> : vector<2x64xf32>
    %106 = tpu.matmul %103, %105, %cst_66 {dimension_numbers = #tpu.dot_dimension_numbers<[1], [0], [0], [1], [0, 0, 1, 1], [], []>} : vector<2x12xf32>, vector<12x64xf32>, vector<2x64xf32> -> vector<2x64xf32>
    %107 = arith.addf %101, %106 : vector<2x64xf32>
    %108 = vector.extract_strided_slice %81 {offsets = [0, 4, 0], sizes = [2, 1, 12], strides = [1, 1, 1]} : vector<2x16x12xf32> to vector<2x1x12xf32>
    %109 = vector.shape_cast %108 : vector<2x1x12xf32> to vector<2x12xf32>
    %c4 = arith.constant 4 : index
    %c0_67 = arith.constant 0 : index
    %c0_68 = arith.constant 0 : index
    %110 = vector.load %arg7[%c4, %c0_67, %c0_68] : memref<16x12x64xf32, #tpu.memory_space<vmem>>, vector<1x12x64xf32>
    %111 = vector.shape_cast %110 : vector<1x12x64xf32> to vector<12x64xf32>
    %cst_69 = arith.constant dense<0.000000e+00> : vector<2x64xf32>
    %112 = tpu.matmul %109, %111, %cst_69 {dimension_numbers = #tpu.dot_dimension_numbers<[1], [0], [0], [1], [0, 0, 1, 1], [], []>} : vector<2x12xf32>, vector<12x64xf32>, vector<2x64xf32> -> vector<2x64xf32>
    %113 = arith.addf %107, %112 : vector<2x64xf32>
    %114 = vector.extract_strided_slice %81 {offsets = [0, 5, 0], sizes = [2, 1, 12], strides = [1, 1, 1]} : vector<2x16x12xf32> to vector<2x1x12xf32>
    %115 = vector.shape_cast %114 : vector<2x1x12xf32> to vector<2x12xf32>
    %c5 = arith.constant 5 : index
    %c0_70 = arith.constant 0 : index
    %c0_71 = arith.constant 0 : index
    %116 = vector.load %arg7[%c5, %c0_70, %c0_71] : memref<16x12x64xf32, #tpu.memory_space<vmem>>, vector<1x12x64xf32>
    %117 = vector.shape_cast %116 : vector<1x12x64xf32> to vector<12x64xf32>
    %cst_72 = arith.constant dense<0.000000e+00> : vector<2x64xf32>
    %118 = tpu.matmul %115, %117, %cst_72 {dimension_numbers = #tpu.dot_dimension_numbers<[1], [0], [0], [1], [0, 0, 1, 1], [], []>} : vector<2x12xf32>, vector<12x64xf32>, vector<2x64xf32> -> vector<2x64xf32>
    %119 = arith.addf %113, %118 : vector<2x64xf32>
    %120 = vector.extract_strided_slice %81 {offsets = [0, 6, 0], sizes = [2, 1, 12], strides = [1, 1, 1]} : vector<2x16x12xf32> to vector<2x1x12xf32>
    %121 = vector.shape_cast %120 : vector<2x1x12xf32> to vector<2x12xf32>
    %c6 = arith.constant 6 : index
    %c0_73 = arith.constant 0 : index
    %c0_74 = arith.constant 0 : index
    %122 = vector.load %arg7[%c6, %c0_73, %c0_74] : memref<16x12x64xf32, #tpu.memory_space<vmem>>, vector<1x12x64xf32>
    %123 = vector.shape_cast %122 : vector<1x12x64xf32> to vector<12x64xf32>
    %cst_75 = arith.constant dense<0.000000e+00> : vector<2x64xf32>
    %124 = tpu.matmul %121, %123, %cst_75 {dimension_numbers = #tpu.dot_dimension_numbers<[1], [0], [0], [1], [0, 0, 1, 1], [], []>} : vector<2x12xf32>, vector<12x64xf32>, vector<2x64xf32> -> vector<2x64xf32>
    %125 = arith.addf %119, %124 : vector<2x64xf32>
    %126 = vector.extract_strided_slice %81 {offsets = [0, 7, 0], sizes = [2, 1, 12], strides = [1, 1, 1]} : vector<2x16x12xf32> to vector<2x1x12xf32>
    %127 = vector.shape_cast %126 : vector<2x1x12xf32> to vector<2x12xf32>
    %c7 = arith.constant 7 : index
    %c0_76 = arith.constant 0 : index
    %c0_77 = arith.constant 0 : index
    %128 = vector.load %arg7[%c7, %c0_76, %c0_77] : memref<16x12x64xf32, #tpu.memory_space<vmem>>, vector<1x12x64xf32>
    %129 = vector.shape_cast %128 : vector<1x12x64xf32> to vector<12x64xf32>
    %cst_78 = arith.constant dense<0.000000e+00> : vector<2x64xf32>
    %130 = tpu.matmul %127, %129, %cst_78 {dimension_numbers = #tpu.dot_dimension_numbers<[1], [0], [0], [1], [0, 0, 1, 1], [], []>} : vector<2x12xf32>, vector<12x64xf32>, vector<2x64xf32> -> vector<2x64xf32>
    %131 = arith.addf %125, %130 : vector<2x64xf32>
    %132 = vector.extract_strided_slice %81 {offsets = [0, 8, 0], sizes = [2, 1, 12], strides = [1, 1, 1]} : vector<2x16x12xf32> to vector<2x1x12xf32>
    %133 = vector.shape_cast %132 : vector<2x1x12xf32> to vector<2x12xf32>
    %c8 = arith.constant 8 : index
    %c0_79 = arith.constant 0 : index
    %c0_80 = arith.constant 0 : index
    %134 = vector.load %arg7[%c8, %c0_79, %c0_80] : memref<16x12x64xf32, #tpu.memory_space<vmem>>, vector<1x12x64xf32>
    %135 = vector.shape_cast %134 : vector<1x12x64xf32> to vector<12x64xf32>
    %cst_81 = arith.constant dense<0.000000e+00> : vector<2x64xf32>
    %136 = tpu.matmul %133, %135, %cst_81 {dimension_numbers = #tpu.dot_dimension_numbers<[1], [0], [0], [1], [0, 0, 1, 1], [], []>} : vector<2x12xf32>, vector<12x64xf32>, vector<2x64xf32> -> vector<2x64xf32>
    %137 = arith.addf %131, %136 : vector<2x64xf32>
    %138 = vector.extract_strided_slice %81 {offsets = [0, 9, 0], sizes = [2, 1, 12], strides = [1, 1, 1]} : vector<2x16x12xf32> to vector<2x1x12xf32>
    %139 = vector.shape_cast %138 : vector<2x1x12xf32> to vector<2x12xf32>
    %c9 = arith.constant 9 : index
    %c0_82 = arith.constant 0 : index
    %c0_83 = arith.constant 0 : index
    %140 = vector.load %arg7[%c9, %c0_82, %c0_83] : memref<16x12x64xf32, #tpu.memory_space<vmem>>, vector<1x12x64xf32>
    %141 = vector.shape_cast %140 : vector<1x12x64xf32> to vector<12x64xf32>
    %cst_84 = arith.constant dense<0.000000e+00> : vector<2x64xf32>
    %142 = tpu.matmul %139, %141, %cst_84 {dimension_numbers = #tpu.dot_dimension_numbers<[1], [0], [0], [1], [0, 0, 1, 1], [], []>} : vector<2x12xf32>, vector<12x64xf32>, vector<2x64xf32> -> vector<2x64xf32>
    %143 = arith.addf %137, %142 : vector<2x64xf32>
    %144 = vector.extract_strided_slice %81 {offsets = [0, 10, 0], sizes = [2, 1, 12], strides = [1, 1, 1]} : vector<2x16x12xf32> to vector<2x1x12xf32>
    %145 = vector.shape_cast %144 : vector<2x1x12xf32> to vector<2x12xf32>
    %c10 = arith.constant 10 : index
    %c0_85 = arith.constant 0 : index
    %c0_86 = arith.constant 0 : index
    %146 = vector.load %arg7[%c10, %c0_85, %c0_86] : memref<16x12x64xf32, #tpu.memory_space<vmem>>, vector<1x12x64xf32>
    %147 = vector.shape_cast %146 : vector<1x12x64xf32> to vector<12x64xf32>
    %cst_87 = arith.constant dense<0.000000e+00> : vector<2x64xf32>
    %148 = tpu.matmul %145, %147, %cst_87 {dimension_numbers = #tpu.dot_dimension_numbers<[1], [0], [0], [1], [0, 0, 1, 1], [], []>} : vector<2x12xf32>, vector<12x64xf32>, vector<2x64xf32> -> vector<2x64xf32>
    %149 = arith.addf %143, %148 : vector<2x64xf32>
    %150 = vector.extract_strided_slice %81 {offsets = [0, 11, 0], sizes = [2, 1, 12], strides = [1, 1, 1]} : vector<2x16x12xf32> to vector<2x1x12xf32>
    %151 = vector.shape_cast %150 : vector<2x1x12xf32> to vector<2x12xf32>
    %c11 = arith.constant 11 : index
    %c0_88 = arith.constant 0 : index
    %c0_89 = arith.constant 0 : index
    %152 = vector.load %arg7[%c11, %c0_88, %c0_89] : memref<16x12x64xf32, #tpu.memory_space<vmem>>, vector<1x12x64xf32>
    %153 = vector.shape_cast %152 : vector<1x12x64xf32> to vector<12x64xf32>
    %cst_90 = arith.constant dense<0.000000e+00> : vector<2x64xf32>
    %154 = tpu.matmul %151, %153, %cst_90 {dimension_numbers = #tpu.dot_dimension_numbers<[1], [0], [0], [1], [0, 0, 1, 1], [], []>} : vector<2x12xf32>, vector<12x64xf32>, vector<2x64xf32> -> vector<2x64xf32>
    %155 = arith.addf %149, %154 : vector<2x64xf32>
    %156 = vector.extract_strided_slice %81 {offsets = [0, 12, 0], sizes = [2, 1, 12], strides = [1, 1, 1]} : vector<2x16x12xf32> to vector<2x1x12xf32>
    %157 = vector.shape_cast %156 : vector<2x1x12xf32> to vector<2x12xf32>
    %c12 = arith.constant 12 : index
    %c0_91 = arith.constant 0 : index
    %c0_92 = arith.constant 0 : index
    %158 = vector.load %arg7[%c12, %c0_91, %c0_92] : memref<16x12x64xf32, #tpu.memory_space<vmem>>, vector<1x12x64xf32>
    %159 = vector.shape_cast %158 : vector<1x12x64xf32> to vector<12x64xf32>
    %cst_93 = arith.constant dense<0.000000e+00> : vector<2x64xf32>
    %160 = tpu.matmul %157, %159, %cst_93 {dimension_numbers = #tpu.dot_dimension_numbers<[1], [0], [0], [1], [0, 0, 1, 1], [], []>} : vector<2x12xf32>, vector<12x64xf32>, vector<2x64xf32> -> vector<2x64xf32>
    %161 = arith.addf %155, %160 : vector<2x64xf32>
    %162 = vector.extract_strided_slice %81 {offsets = [0, 13, 0], sizes = [2, 1, 12], strides = [1, 1, 1]} : vector<2x16x12xf32> to vector<2x1x12xf32>
    %163 = vector.shape_cast %162 : vector<2x1x12xf32> to vector<2x12xf32>
    %c13 = arith.constant 13 : index
    %c0_94 = arith.constant 0 : index
    %c0_95 = arith.constant 0 : index
    %164 = vector.load %arg7[%c13, %c0_94, %c0_95] : memref<16x12x64xf32, #tpu.memory_space<vmem>>, vector<1x12x64xf32>
    %165 = vector.shape_cast %164 : vector<1x12x64xf32> to vector<12x64xf32>
    %cst_96 = arith.constant dense<0.000000e+00> : vector<2x64xf32>
    %166 = tpu.matmul %163, %165, %cst_96 {dimension_numbers = #tpu.dot_dimension_numbers<[1], [0], [0], [1], [0, 0, 1, 1], [], []>} : vector<2x12xf32>, vector<12x64xf32>, vector<2x64xf32> -> vector<2x64xf32>
    %167 = arith.addf %161, %166 : vector<2x64xf32>
    %168 = vector.extract_strided_slice %81 {offsets = [0, 14, 0], sizes = [2, 1, 12], strides = [1, 1, 1]} : vector<2x16x12xf32> to vector<2x1x12xf32>
    %169 = vector.shape_cast %168 : vector<2x1x12xf32> to vector<2x12xf32>
    %c14 = arith.constant 14 : index
    %c0_97 = arith.constant 0 : index
    %c0_98 = arith.constant 0 : index
    %170 = vector.load %arg7[%c14, %c0_97, %c0_98] : memref<16x12x64xf32, #tpu.memory_space<vmem>>, vector<1x12x64xf32>
    %171 = vector.shape_cast %170 : vector<1x12x64xf32> to vector<12x64xf32>
    %cst_99 = arith.constant dense<0.000000e+00> : vector<2x64xf32>
    %172 = tpu.matmul %169, %171, %cst_99 {dimension_numbers = #tpu.dot_dimension_numbers<[1], [0], [0], [1], [0, 0, 1, 1], [], []>} : vector<2x12xf32>, vector<12x64xf32>, vector<2x64xf32> -> vector<2x64xf32>
    %173 = arith.addf %167, %172 : vector<2x64xf32>
    %174 = vector.extract_strided_slice %81 {offsets = [0, 15, 0], sizes = [2, 1, 12], strides = [1, 1, 1]} : vector<2x16x12xf32> to vector<2x1x12xf32>
    %175 = vector.shape_cast %174 : vector<2x1x12xf32> to vector<2x12xf32>
    %c15 = arith.constant 15 : index
    %c0_100 = arith.constant 0 : index
    %c0_101 = arith.constant 0 : index
    %176 = vector.load %arg7[%c15, %c0_100, %c0_101] : memref<16x12x64xf32, #tpu.memory_space<vmem>>, vector<1x12x64xf32>
    %177 = vector.shape_cast %176 : vector<1x12x64xf32> to vector<12x64xf32>
    %cst_102 = arith.constant dense<0.000000e+00> : vector<2x64xf32>
    %178 = tpu.matmul %175, %177, %cst_102 {dimension_numbers = #tpu.dot_dimension_numbers<[1], [0], [0], [1], [0, 0, 1, 1], [], []>} : vector<2x12xf32>, vector<12x64xf32>, vector<2x64xf32> -> vector<2x64xf32>
    %179 = arith.addf %173, %178 : vector<2x64xf32>
    %180 = vector.extract_strided_slice %179 {offsets = [0, 0], sizes = [2, 16], strides = [1, 1]} : vector<2x64xf32> to vector<2x16xf32>
    %cst_103 = arith.constant dense<0xFF800000> : vector<2xf32>
    %181 = vector.multi_reduction <maximumf>, %180, %cst_103 [1] : vector<2x16xf32> to vector<2xf32>
    %182 = vector.shape_cast %181 : vector<2xf32> to vector<2x1xf32>
    %183 = vector.broadcast %182 : vector<2x1xf32> to vector<2x16xf32>
    %184 = arith.subf %180, %183 : vector<2x16xf32>
    %185 = math.exp %184 : vector<2x16xf32>
    %cst_104 = arith.constant dense<0.000000e+00> : vector<2xf32>
    %186 = vector.multi_reduction <add>, %185, %cst_104 [1] : vector<2x16xf32> to vector<2xf32>
    %187 = vector.shape_cast %186 : vector<2xf32> to vector<2x1xf32>
    %188 = tpu.reciprocal %187 {approx = true} : vector<2x1xf32> -> vector<2x1xf32>
    %189 = vector.broadcast %188 : vector<2x1xf32> to vector<2x16xf32>
    %190 = arith.mulf %185, %189 : vector<2x16xf32>
    %191 = vector.extract_strided_slice %179 {offsets = [0, 16], sizes = [2, 16], strides = [1, 1]} : vector<2x64xf32> to vector<2x16xf32>
    %cst_105 = arith.constant dense<0xFF800000> : vector<2xf32>
    %192 = vector.multi_reduction <maximumf>, %191, %cst_105 [1] : vector<2x16xf32> to vector<2xf32>
    %193 = vector.shape_cast %192 : vector<2xf32> to vector<2x1xf32>
    %194 = vector.broadcast %193 : vector<2x1xf32> to vector<2x16xf32>
    %195 = arith.subf %191, %194 : vector<2x16xf32>
    %196 = math.exp %195 : vector<2x16xf32>
    %cst_106 = arith.constant dense<0.000000e+00> : vector<2xf32>
    %197 = vector.multi_reduction <add>, %196, %cst_106 [1] : vector<2x16xf32> to vector<2xf32>
    %198 = vector.shape_cast %197 : vector<2xf32> to vector<2x1xf32>
    %199 = tpu.reciprocal %198 {approx = true} : vector<2x1xf32> -> vector<2x1xf32>
    %200 = vector.broadcast %199 : vector<2x1xf32> to vector<2x16xf32>
    %201 = arith.mulf %196, %200 : vector<2x16xf32>
    %202 = vector.extract_strided_slice %179 {offsets = [0, 32], sizes = [2, 16], strides = [1, 1]} : vector<2x64xf32> to vector<2x16xf32>
    %cst_107 = arith.constant dense<0xFF800000> : vector<2xf32>
    %203 = vector.multi_reduction <maximumf>, %202, %cst_107 [1] : vector<2x16xf32> to vector<2xf32>
    %204 = vector.shape_cast %203 : vector<2xf32> to vector<2x1xf32>
    %205 = vector.broadcast %204 : vector<2x1xf32> to vector<2x16xf32>
    %206 = arith.subf %202, %205 : vector<2x16xf32>
    %207 = math.exp %206 : vector<2x16xf32>
    %cst_108 = arith.constant dense<0.000000e+00> : vector<2xf32>
    %208 = vector.multi_reduction <add>, %207, %cst_108 [1] : vector<2x16xf32> to vector<2xf32>
    %209 = vector.shape_cast %208 : vector<2xf32> to vector<2x1xf32>
    %210 = tpu.reciprocal %209 {approx = true} : vector<2x1xf32> -> vector<2x1xf32>
    %211 = vector.broadcast %210 : vector<2x1xf32> to vector<2x16xf32>
    %212 = arith.mulf %207, %211 : vector<2x16xf32>
    %213 = vector.extract_strided_slice %179 {offsets = [0, 48], sizes = [2, 16], strides = [1, 1]} : vector<2x64xf32> to vector<2x16xf32>
    %cst_109 = arith.constant dense<0xFF800000> : vector<2xf32>
    %214 = vector.multi_reduction <maximumf>, %213, %cst_109 [1] : vector<2x16xf32> to vector<2xf32>
    %215 = vector.shape_cast %214 : vector<2xf32> to vector<2x1xf32>
    %216 = vector.broadcast %215 : vector<2x1xf32> to vector<2x16xf32>
    %217 = arith.subf %213, %216 : vector<2x16xf32>
    %218 = math.exp %217 : vector<2x16xf32>
    %cst_110 = arith.constant dense<0.000000e+00> : vector<2xf32>
    %219 = vector.multi_reduction <add>, %218, %cst_110 [1] : vector<2x16xf32> to vector<2xf32>
    %220 = vector.shape_cast %219 : vector<2xf32> to vector<2x1xf32>
    %221 = tpu.reciprocal %220 {approx = true} : vector<2x1xf32> -> vector<2x1xf32>
    %222 = vector.broadcast %221 : vector<2x1xf32> to vector<2x16xf32>
    %223 = arith.mulf %218, %222 : vector<2x16xf32>
    %224 = tpu.concatenate %190, %201, %212, %223 in 1 : vector<2x16xf32>, vector<2x16xf32>, vector<2x16xf32>, vector<2x16xf32> -> vector<2x64xf32>
    %c0_111 = arith.constant 0 : index
    %c0_112 = arith.constant 0 : index
    %225 = vector.load %arg9[%c0_111, %c0_112] : memref<2x64xf32, #tpu.memory_space<vmem>>, vector<2x64xf32>
    tpu.vector_store %arg9[%c0_111, %c0_112], %224 {strides = array<i32>} : memref<2x64xf32, #tpu.memory_space<vmem>>, vector<2x64xf32>,
    return
  }
}

</mosaic_0001>

<llo_original>
// kernel: conv_attention_forward.2
$region0: #{conv_attention_forward.2}
  #allocation0 [shape = 'u32[]', space=smem, size = 0x4, offset = 0x4, fixed_abs, tag = 'smem constant byte address 0x4 - core index']
  #allocation1 [shape = 'u32[144,128]{1,0:T(1,128)}', space=vmem, size = 0x12000, scoped, tag = 'internal scratch']
  %s0 = inlined_call_operand.vmem [shape: f32[3,4,12], index: 0, kind: input, shape index: {}]
  %s1 = inlined_call_operand.vmem [shape: f32[1,12], index: 1, kind: input, shape index: {}]
  %s2 = inlined_call_operand.vmem [shape: f32[3,12,12], index: 2, kind: input, shape index: {}]
  %s3 = inlined_call_operand.vmem [shape: f32[1,12], index: 3, kind: input, shape index: {}]
  %s4 = inlined_call_operand.vmem [shape: f32[3,12,12], index: 4, kind: input, shape index: {}]
  %s5 = inlined_call_operand.vmem [shape: f32[1,12], index: 5, kind: input, shape index: {}]
  %s6 = inlined_call_operand.vmem [shape: f32[16,12,64], index: 6, kind: input, shape index: {}]
  %s7 = inlined_call_operand.vmem [shape: f32[1,64], index: 7, kind: input, shape index: {}]
  %s8 = inlined_call_operand.vmem [shape: f32[2,4,16], index: 8, kind: input, shape index: {}]
  %s9 = inlined_call_operand.vmem [shape: f32[2,64], index: 9, kind: output, shape index: {}]
  %s10 = sld [smem:[#allocation0]]
  $region46: #{conv_attention_forward.2} parent=0
    _
  %s12 = ssub.s32 1, %s10
  %s13 = scalar_select 0, %s12, %s10
  $region1: #{conv_attention_forward.2} parent=0
    #allocation2 [shape = 'u8[16384]{0}', space=vmem, size = 0x4000, dematerialized = true, scoped, tag = 'FusionAdapter Buffer %fusion.1 = f32[2,16,4]{2,1,0:T(8,128)} fusion(%param_8.1), kind=kLoop, calls=%fused_computation.1.clone, metadata={op_name="jit(conv_attention_forward)/transpose" stack_frame_id=7}']
    // Predicated region
    $region2: #{conv_attention_forward.2} parent=1 // pred_check
      _
    $region3: #{conv_attention_forward.2} parent=1 // pred_check_branch
      %15 = sbr.rel (0) target = $region5
    $region4: #{conv_attention_forward.2} parent=1 // pred_region
      _
    $region5: #{conv_attention_forward.2} parent=1 // pred_fallthru
      _
    // Predicated region
    $region6: #{conv_attention_forward.2} parent=1 // pred_check
      _
    $region7: #{conv_attention_forward.2} parent=1 // pred_check_branch
      %17 = sbr.rel (0) target = $region9
    $region8: #{conv_attention_forward.2} parent=1 // pred_region
      _
    $region9: #{conv_attention_forward.2} parent=1 // pred_fallthru
      _
    // Predicated region
    $region10: #{conv_attention_forward.2} parent=1 // pred_check
      _
    $region11: #{conv_attention_forward.2} parent=1 // pred_check_branch
      %19 = sbr.rel (0) target = $region13
    $region12: #{conv_attention_forward.2} parent=1 // pred_region
      _
    $region13: #{conv_attention_forward.2} parent=1 // pred_fallthru
      _
    // Predicated region
    $region14: #{conv_attention_forward.2} parent=1 // pred_check
      _
    $region15: #{conv_attention_forward.2} parent=1 // pred_check_branch
      %21 = sbr.rel (0) target = $region17
    $region16: #{conv_attention_forward.2} parent=1 // pred_region
      _
    $region17: #{conv_attention_forward.2} parent=1 // pred_fallthru
      _
    // Predicated region
    $region18: #{conv_attention_forward.2} parent=1 // pred_check
      _
    $region19: #{conv_attention_forward.2} parent=1 // pred_check_branch
      %23 = sbr.rel (0) target = $region21
    $region20: #{conv_attention_forward.2} parent=1 // pred_region
      _
    $region21: #{conv_attention_forward.2} parent=1 // pred_fallthru
      _
    // Predicated region
    $region22: #{conv_attention_forward.2} parent=1 // pred_check
      _
    $region23: #{conv_attention_forward.2} parent=1 // pred_check_branch
      %25 = sbr.rel (0) target = $region25
    $region24: #{conv_attention_forward.2} parent=1 // pred_region
      _
    $region25: #{conv_attention_forward.2} parent=1 // pred_fallthru
      _
    // Predicated region
    $region26: #{conv_attention_forward.2} parent=1 // pred_check
      _
    $region27: #{conv_attention_forward.2} parent=1 // pred_check_branch
      %27 = sbr.rel (0) target = $region29
    $region28: #{conv_attention_forward.2} parent=1 // pred_region
      _
    $region29: #{conv_attention_forward.2} parent=1 // pred_fallthru
      _
    // Predicated region
    $region30: #{conv_attention_forward.2} parent=1 // pred_check
      _
    $region31: #{conv_attention_forward.2} parent=1 // pred_check_branch
      %29 = sbr.rel (0) target = $region33
    $region32: #{conv_attention_forward.2} parent=1 // pred_region
      _
    $region33: #{conv_attention_forward.2} parent=1 // pred_fallthru
      _
    // Predicated region
    $region34: #{conv_attention_forward.2} parent=1 // pred_check
      _
    $region35: #{conv_attention_forward.2} parent=1 // pred_check_branch
      %31 = sbr.rel (0) target = $region37
    $region36: #{conv_attention_forward.2} parent=1 // pred_region
      _
    $region37: #{conv_attention_forward.2} parent=1 // pred_fallthru
      _
    %v32 = vld [vmem:[%s8] sm:$0xff]
    %34 = vst [vmem:[#allocation2] sm:$0xff] %v32
    %s35 = scalar_lea.vmem %s8, 8
    %v36 = vld [vmem:[%s35] sm:$0xff]
    %s37 = scalar_lea.vmem [#allocation2], 8
    %39 = vst [vmem:[%s37] sm:$0xff] %v36
    %s40 = scalar_lea.vmem %s8, 16
    %v41 = vld [vmem:[%s40] sm:$0xff]
    %s42 = scalar_lea.vmem [#allocation2], 16
    %44 = vst [vmem:[%s42] sm:$0xff] %v41
    %s45 = scalar_lea.vmem %s8, 24
    %v46 = vld [vmem:[%s45] sm:$0xff]
    %s47 = scalar_lea.vmem [#allocation2], 24
    %49 = vst [vmem:[%s47] sm:$0xff] %v46
    %v50 = vld [vmem:[#allocation2] sm:$0xff]
    %v51 = vld [vmem:[#allocation2 + $0x8] sm:$0xff]
    %v52 = vld [vmem:[#allocation2 + $0x10] sm:$0xff]
    %v53 = vld [vmem:[#allocation2 + $0x18] sm:$0xff]
    %vm58 = vcmask 1040384
    %v59 = vrot.slane %v50, 7
    %v60 = vrot.slane %v51, 7
    %v61 = vsel %vm58, %v59, %v60
    %v62 = vrot.slane %v52, 7
    %v63 = vrot.slane %v53, 7
    %v64 = vsel %vm58, %v62, %v63
    %v67 = vsel %vm58, 0.0, %v59
    %v68 = vsel %vm58, 0.0, %v62
    %vm69 = vcmask 1046528
    %v70 = vrot.slane %v50, 1
    %v71 = vrot.slane %v51, 1
    %v72 = vsel %vm69, %v70, %v71
    %v73 = vrot.slane %v52, 1
    %v74 = vrot.slane %v53, 1
    %v75 = vsel %vm69, %v73, %v74
    %v78 = vsel %vm69, %v71, 0.0
    %v79 = vsel %vm69, %v74, 0.0
    %v80 = vld [vmem:[%s0] sm:$0xf]
    %s81 = scalar_lea.vmem %s0, 4
    %v82 = vld [vmem:[%s81] sm:$0xf]
    %vm83 = vcmask 31744
    %v84 = vsel %vm83, %v50, 0
    %v86 = vsel %vm83, %v51, 0
    %v88 = vsel %vm83, %v52, 0
    %v90 = vsel %vm83, %v53, 0
    %vm92 = vcmask 1043456
    %v94 = vsel %vm92, %v82, 0
    %96 = vmatprep.subr.mxu0 0.0
    %97 = vmatpush1.msra.mxu0 %v94
    %98 = vmatprep.subr.mxu0 0.0
    %99 = vmatpush1.msra.mxu0 0.0
    %100 = vmatprep.subr.mxu0 0.0
    %101 = vmatpush1.msra.mxu0 0.0
    %102 = vmatprep.subr.mxu0 0.0
    %103 = vmatpush1.msra.mxu0 0.0
    %104 = vmatprep.subr.mxu0 0.0
    %105 = vmatpush1.msra.mxu0 0.0
    %106 = vmatprep.subr.mxu0 0.0
    %107 = vmatpush1.msra.mxu0 0.0
    %108 = vmatprep.subr.mxu0 0.0
    %109 = vmatpush1.msra.mxu0 0.0
    %110 = vmatprep.subr.mxu0 0.0
    %111 = vmatpush1.msra.mxu0 0.0
    %112 = vmatprep.subr.mxu0 0.0
    %113 = vmatpush1.msra.mxu0 0.0
    %114 = vmatprep.subr.mxu0 0.0
    %115 = vmatpush1.msra.mxu0 0.0
    %116 = vmatprep.subr.mxu0 0.0
    %117 = vmatpush1.msra.mxu0 0.0
    %118 = vmatprep.subr.mxu0 0.0
    %119 = vmatpush1.msra.mxu0 0.0
    %120 = vmatprep.subr.mxu0 0.0
    %121 = vmatpush1.msra.mxu0 0.0
    %122 = vmatprep.subr.mxu0 0.0
    %123 = vmatpush1.msra.mxu0 0.0
    %124 = vmatprep.subr.mxu0 0.0
    %125 = vmatpush1.msra.mxu0 0.0
    %126 = vmatprep.subr.mxu0 0.0
    %127 = vmatpush1.msra.mxu0 0.0
    %128 = vmatprep.subr.mxu0 0.0
    %129 = vmatpush1.msra.mxu0 0.0
    %130 = vmatprep.subr.mxu0 0.0
    %131 = vmatpush1.msra.mxu0 0.0
    %132 = vmatprep.subr.mxu0 0.0
    %133 = vmatpush1.msra.mxu0 0.0
    %134 = vmatprep.subr.mxu0 0.0
    %135 = vmatpush1.msra.mxu0 0.0
    %136 = vmatprep.subr.mxu0 0.0
    %137 = vmatpush1.msra.mxu0 0.0
    %138 = vmatprep.subr.mxu0 0.0
    %139 = vmatpush1.msra.mxu0 0.0
    %140 = vmatprep.subr.mxu0 0.0
    %141 = vmatpush1.msra.mxu0 0.0
    %142 = vmatprep.subr.mxu0 0.0
    %143 = vmatpush1.msra.mxu0 0.0
    %144 = vmatprep.subr.mxu0 0.0
    %145 = vmatpush1.msra.mxu0 0.0
    %146 = vmatprep.subr.mxu0 0.0
    %147 = vmatpush1.msra.mxu0 0.0
    %148 = vmatprep.subr.mxu0 0.0
    %149 = vmatpush1.msra.mxu0 0.0
    %150 = vmatprep.subr.mxu0 0.0
    %151 = vmatpush1.msra.mxu0 0.0
    %152 = vmatprep.subr.mxu0 0.0
    %153 = vmatpush1.msra.mxu0 0.0
    %154 = vmatprep.subr.mxu0 0.0
    %155 = vmatpush1.msra.mxu0 0.0
    %156 = vmatprep.subr.mxu0 0.0
    %157 = vmatpush1.msra.mxu0 0.0
    %158 = vmatprep.subr.mxu0 0.0
    %159 = vmatpush1.msra.mxu0 0.0
    %160 = vmatprep.mubr.f32.mxu0 0.0
    %161 = vmatmul.mubr.f32.gmra.mrb[0].mxu0 %v84
    %v162 = vpop.f32.mrb[0].mxu0
    %v163 = vadd.f32 0.0, %v162
    %v164 = vpop.f32.mrb[0].mxu0
    %165 = vmatprep.mubr.f32.mxu0 0.0
    %166 = vmatmul.mubr.f32.gmra.mrb[0].mxu0 %v86
    %v167 = vpop.f32.mrb[0].mxu0
    %v168 = vadd.f32 0.0, %v167
    %v169 = vpop.f32.mrb[0].mxu0
    %170 = vmatprep.mubr.f32.mxu0 0.0
    %171 = vmatmul.mubr.f32.gmra.mrb[0].mxu0 %v88
    %v172 = vpop.f32.mrb[0].mxu0
    %v173 = vadd.f32 0.0, %v172
    %v174 = vpop.f32.mrb[0].mxu0
    %175 = vmatprep.mubr.f32.mxu0 0.0
    %176 = vmatmul.mubr.f32.gmra.mrb[0].mxu0 %v90
    %v177 = vpop.f32.mrb[0].mxu0
    %v178 = vadd.f32 0.0, %v177
    %v179 = vpop.f32.mrb[0].mxu0
    %180 = vdwg.mxu0
    %v182 = vsel %vm83, %v67, 0
    %v184 = vsel %vm83, %v61, 0
    %v187 = vsel %vm83, %v68, 0
    %v189 = vsel %vm83, %v64, 0
    %v192 = vsel %vm92, %v80, 0
    %194 = vmatprep.subr.mxu0 0.0
    %195 = vmatpush1.msra.mxu0 %v192
    %196 = vmatprep.subr.mxu0 0.0
    %197 = vmatpush1.msra.mxu0 0.0
    %198 = vmatprep.subr.mxu0 0.0
    %199 = vmatpush1.msra.mxu0 0.0
    %200 = vmatprep.subr.mxu0 0.0
    %201 = vmatpush1.msra.mxu0 0.0
    %202 = vmatprep.subr.mxu0 0.0
    %203 = vmatpush1.msra.mxu0 0.0
    %204 = vmatprep.subr.mxu0 0.0
    %205 = vmatpush1.msra.mxu0 0.0
    %206 = vmatprep.subr.mxu0 0.0
    %207 = vmatpush1.msra.mxu0 0.0
    %208 = vmatprep.subr.mxu0 0.0
    %209 = vmatpush1.msra.mxu0 0.0
    %210 = vmatprep.subr.mxu0 0.0
    %211 = vmatpush1.msra.mxu0 0.0
    %212 = vmatprep.subr.mxu0 0.0
    %213 = vmatpush1.msra.mxu0 0.0
    %214 = vmatprep.subr.mxu0 0.0
    %215 = vmatpush1.msra.mxu0 0.0
    %216 = vmatprep.subr.mxu0 0.0
    %217 = vmatpush1.msra.mxu0 0.0
    %218 = vmatprep.subr.mxu0 0.0
    %219 = vmatpush1.msra.mxu0 0.0
    %220 = vmatprep.subr.mxu0 0.0
    %221 = vmatpush1.msra.mxu0 0.0
    %222 = vmatprep.subr.mxu0 0.0
    %223 = vmatpush1.msra.mxu0 0.0
    %224 = vmatprep.subr.mxu0 0.0
    %225 = vmatpush1.msra.mxu0 0.0
    %226 = vmatprep.subr.mxu0 0.0
    %227 = vmatpush1.msra.mxu0 0.0
    %228 = vmatprep.subr.mxu0 0.0
    %229 = vmatpush1.msra.mxu0 0.0
    %230 = vmatprep.subr.mxu0 0.0
    %231 = vmatpush1.msra.mxu0 0.0
    %232 = vmatprep.subr.mxu0 0.0
    %233 = vmatpush1.msra.mxu0 0.0
    %234 = vmatprep.subr.mxu0 0.0
    %235 = vmatpush1.msra.mxu0 0.0
    %236 = vmatprep.subr.mxu0 0.0
    %237 = vmatpush1.msra.mxu0 0.0
    %238 = vmatprep.subr.mxu0 0.0
    %239 = vmatpush1.msra.mxu0 0.0
    %240 = vmatprep.subr.mxu0 0.0
    %241 = vmatpush1.msra.mxu0 0.0
    %242 = vmatprep.subr.mxu0 0.0
    %243 = vmatpush1.msra.mxu0 0.0
    %244 = vmatprep.subr.mxu0 0.0
    %245 = vmatpush1.msra.mxu0 0.0
    %246 = vmatprep.subr.mxu0 0.0
    %247 = vmatpush1.msra.mxu0 0.0
    %248 = vmatprep.subr.mxu0 0.0
    %249 = vmatpush1.msra.mxu0 0.0
    %250 = vmatprep.subr.mxu0 0.0
    %251 = vmatpush1.msra.mxu0 0.0
    %252 = vmatprep.subr.mxu0 0.0
    %253 = vmatpush1.msra.mxu0 0.0
    %254 = vmatprep.subr.mxu0 0.0
    %255 = vmatpush1.msra.mxu0 0.0
    %256 = vmatprep.subr.mxu0 0.0
    %257 = vmatpush1.msra.mxu0 0.0
    %258 = vmatprep.mubr.f32.mxu0 0.0
    %259 = vmatmul.mubr.f32.gmra.mrb[0].mxu0 %v182
    %v260 = vpop.f32.mrb[0].mxu0
    %v261 = vadd.f32 %v163, %v260
    %v262 = vpop.f32.mrb[0].mxu0
    %263 = vmatprep.mubr.f32.mxu0 0.0
    %264 = vmatmul.mubr.f32.gmra.mrb[0].mxu0 %v184
    %v265 = vpop.f32.mrb[0].mxu0
    %v266 = vadd.f32 %v168, %v265
    %v267 = vpop.f32.mrb[0].mxu0
    %268 = vmatprep.mubr.f32.mxu0 0.0
    %269 = vmatmul.mubr.f32.gmra.mrb[0].mxu0 %v187
    %v270 = vpop.f32.mrb[0].mxu0
    %v271 = vadd.f32 %v173, %v270
    %v272 = vpop.f32.mrb[0].mxu0
    %273 = vmatprep.mubr.f32.mxu0 0.0
    %274 = vmatmul.mubr.f32.gmra.mrb[0].mxu0 %v189
    %v275 = vpop.f32.mrb[0].mxu0
    %v276 = vadd.f32 %v178, %v275
    %v277 = vpop.f32.mrb[0].mxu0
    %278 = vdwg.mxu0
    %s279 = scalar_lea.vmem %s0, 8
    %v280 = vld [vmem:[%s279] sm:$0xf]
    %v281 = vsel %vm83, %v72, 0
    %v284 = vsel %vm83, %v78, 0
    %v286 = vsel %vm83, %v75, 0
    %v289 = vsel %vm83, %v79, 0
    %v292 = vsel %vm92, %v280, 0
    %294 = vmatprep.subr.mxu0 0.0
    %295 = vmatpush1.msra.mxu0 %v292
    %296 = vmatprep.subr.mxu0 0.0
    %297 = vmatpush1.msra.mxu0 0.0
    %298 = vmatprep.subr.mxu0 0.0
    %299 = vmatpush1.msra.mxu0 0.0
    %300 = vmatprep.subr.mxu0 0.0
    %301 = vmatpush1.msra.mxu0 0.0
    %302 = vmatprep.subr.mxu0 0.0
    %303 = vmatpush1.msra.mxu0 0.0
    %304 = vmatprep.subr.mxu0 0.0
    %305 = vmatpush1.msra.mxu0 0.0
    %306 = vmatprep.subr.mxu0 0.0
    %307 = vmatpush1.msra.mxu0 0.0
    %308 = vmatprep.subr.mxu0 0.0
    %309 = vmatpush1.msra.mxu0 0.0
    %310 = vmatprep.subr.mxu0 0.0
    %311 = vmatpush1.msra.mxu0 0.0
    %312 = vmatprep.subr.mxu0 0.0
    %313 = vmatpush1.msra.mxu0 0.0
    %314 = vmatprep.subr.mxu0 0.0
    %315 = vmatpush1.msra.mxu0 0.0
    %316 = vmatprep.subr.mxu0 0.0
    %317 = vmatpush1.msra.mxu0 0.0
    %318 = vmatprep.subr.mxu0 0.0
    %319 = vmatpush1.msra.mxu0 0.0
    %320 = vmatprep.subr.mxu0 0.0
    %321 = vmatpush1.msra.mxu0 0.0
    %322 = vmatprep.subr.mxu0 0.0
    %323 = vmatpush1.msra.mxu0 0.0
    %324 = vmatprep.subr.mxu0 0.0
    %325 = vmatpush1.msra.mxu0 0.0
    %326 = vmatprep.subr.mxu0 0.0
    %327 = vmatpush1.msra.mxu0 0.0
    %328 = vmatprep.subr.mxu0 0.0
    %329 = vmatpush1.msra.mxu0 0.0
    %330 = vmatprep.subr.mxu0 0.0
    %331 = vmatpush1.msra.mxu0 0.0
    %332 = vmatprep.subr.mxu0 0.0
    %333 = vmatpush1.msra.mxu0 0.0
    %334 = vmatprep.subr.mxu0 0.0
    %335 = vmatpush1.msra.mxu0 0.0
    %336 = vmatprep.subr.mxu0 0.0
    %337 = vmatpush1.msra.mxu0 0.0
    %338 = vmatprep.subr.mxu0 0.0
    %339 = vmatpush1.msra.mxu0 0.0
    %340 = vmatprep.subr.mxu0 0.0
    %341 = vmatpush1.msra.mxu0 0.0
    %342 = vmatprep.subr.mxu0 0.0
    %343 = vmatpush1.msra.mxu0 0.0
    %344 = vmatprep.subr.mxu0 0.0
    %345 = vmatpush1.msra.mxu0 0.0
    %346 = vmatprep.subr.mxu0 0.0
    %347 = vmatpush1.msra.mxu0 0.0
    %348 = vmatprep.subr.mxu0 0.0
    %349 = vmatpush1.msra.mxu0 0.0
    %350 = vmatprep.subr.mxu0 0.0
    %351 = vmatpush1.msra.mxu0 0.0
    %352 = vmatprep.subr.mxu0 0.0
    %353 = vmatpush1.msra.mxu0 0.0
    %354 = vmatprep.subr.mxu0 0.0
    %355 = vmatpush1.msra.mxu0 0.0
    %356 = vmatprep.subr.mxu0 0.0
    %357 = vmatpush1.msra.mxu0 0.0
    %358 = vmatprep.mubr.f32.mxu0 0.0
    %359 = vmatmul.mubr.f32.gmra.mrb[0].mxu0 %v281
    %v360 = vpop.f32.mrb[0].mxu0
    %v361 = vadd.f32 0.0, %v360
    %v362 = vpop.f32.mrb[0].mxu0
    %363 = vmatprep.mubr.f32.mxu0 0.0
    %364 = vmatmul.mubr.f32.gmra.mrb[0].mxu0 %v284
    %v365 = vpop.f32.mrb[0].mxu0
    %v366 = vadd.f32 0.0, %v365
    %v367 = vpop.f32.mrb[0].mxu0
    %368 = vmatprep.mubr.f32.mxu0 0.0
    %369 = vmatmul.mubr.f32.gmra.mrb[0].mxu0 %v286
    %v370 = vpop.f32.mrb[0].mxu0
    %v371 = vadd.f32 0.0, %v370
    %v372 = vpop.f32.mrb[0].mxu0
    %373 = vmatprep.mubr.f32.mxu0 0.0
    %374 = vmatmul.mubr.f32.gmra.mrb[0].mxu0 %v289
    %v375 = vpop.f32.mrb[0].mxu0
    %v376 = vadd.f32 0.0, %v375
    %v377 = vpop.f32.mrb[0].mxu0
    %378 = vdwg.mxu0
    %v379 = vadd.f32 %v261, %v361
    %v380 = vadd.f32 %v266, %v366
    %v381 = vadd.f32 %v271, %v371
    %v382 = vadd.f32 %v276, %v376
    %v383 = vld [vmem:[%s1] sm:$0x1]
    %v385 = vlaneseq
    %v386 = vshrl.u32 %v385, 7
    %v387 = vsub.s32 0, %v386
    %v388 = vrot.slane %v383, %v387
    %v390 = vadd.f32 %v379, %v388
    %v391 = vadd.f32 %v380, %v388
    %v392 = vadd.f32 %v381, %v388
    %v393 = vadd.f32 %v382, %v388
    %v394 = vmul.f32 %v390, 0.1
    %v395 = vmul.f32 %v391, 0.1
    %v396 = vmul.f32 %v392, 0.1
    %v397 = vmul.f32 %v393, 0.1
    %v398 = vmax.f32 %v390, %v394
    %v399 = vmax.f32 %v391, %v395
    %v400 = vmax.f32 %v392, %v396
    %v401 = vmax.f32 %v393, %v397
    %v406 = vrot.slane %v398, 7
    %v407 = vrot.slane %v399, 7
    %v408 = vsel %vm58, %v406, %v407
    %v409 = vrot.slane %v400, 7
    %v410 = vrot.slane %v401, 7
    %v411 = vsel %vm58, %v409, %v410
    %v414 = vsel %vm58, 0.0, %v406
    %v415 = vsel %vm58, 0.0, %v409
    %v416 = vrot.slane %v398, 1
    %v417 = vrot.slane %v399, 1
    %v418 = vsel %vm69, %v416, %v417
    %v419 = vrot.slane %v400, 1
    %v420 = vrot.slane %v401, 1
    %v421 = vsel %vm69, %v419, %v420
    %v424 = vsel %vm69, %v417, 0.0
    %v425 = vsel %vm69, %v420, 0.0
    %v426 = vld [vmem:[%s2] sm:$0xff]
    %v427 = vld [vmem:[%s2 + $0x8] sm:$0xf]
    %s428 = scalar_lea.vmem %s2, 16
    %v429 = vld [vmem:[%s428] sm:$0xff]
    %v430 = vld [vmem:[%s428 + $0x8] sm:$0xf]
    %vm431 = vcmask 97280
    %v432 = vsel %vm431, %v398, 0
    %v434 = vsel %vm431, %v399, 0
    %v436 = vsel %vm431, %v400, 0
    %v438 = vsel %vm431, %v401, 0
    %v441 = vsel %vm92, %v430, 0
    %443 = vmatprep.subr.mxu0 0.0
    %444 = vmatpush1.msra.mxu0 %v429
    %445 = vmatprep.subr.mxu0 0.0
    %446 = vmatpush1.msra.mxu0 %v441
    %447 = vmatprep.subr.mxu0 0.0
    %448 = vmatpush1.msra.mxu0 0.0
    %449 = vmatprep.subr.mxu0 0.0
    %450 = vmatpush1.msra.mxu0 0.0
    %451 = vmatprep.subr.mxu0 0.0
    %452 = vmatpush1.msra.mxu0 0.0
    %453 = vmatprep.subr.mxu0 0.0
    %454 = vmatpush1.msra.mxu0 0.0
    %455 = vmatprep.subr.mxu0 0.0
    %456 = vmatpush1.msra.mxu0 0.0
    %457 = vmatprep.subr.mxu0 0.0
    %458 = vmatpush1.msra.mxu0 0.0
    %459 = vmatprep.subr.mxu0 0.0
    %460 = vmatpush1.msra.mxu0 0.0
    %461 = vmatprep.subr.mxu0 0.0
    %462 = vmatpush1.msra.mxu0 0.0
    %463 = vmatprep.subr.mxu0 0.0
    %464 = vmatpush1.msra.mxu0 0.0
    %465 = vmatprep.subr.mxu0 0.0
    %466 = vmatpush1.msra.mxu0 0.0
    %467 = vmatprep.subr.mxu0 0.0
    %468 = vmatpush1.msra.mxu0 0.0
    %469 = vmatprep.subr.mxu0 0.0
    %470 = vmatpush1.msra.mxu0 0.0
    %471 = vmatprep.subr.mxu0 0.0
    %472 = vmatpush1.msra.mxu0 0.0
    %473 = vmatprep.subr.mxu0 0.0
    %474 = vmatpush1.msra.mxu0 0.0
    %475 = vmatprep.subr.mxu0 0.0
    %476 = vmatpush1.msra.mxu0 0.0
    %477 = vmatprep.subr.mxu0 0.0
    %478 = vmatpush1.msra.mxu0 0.0
    %479 = vmatprep.subr.mxu0 0.0
    %480 = vmatpush1.msra.mxu0 0.0
    %481 = vmatprep.subr.mxu0 0.0
    %482 = vmatpush1.msra.mxu0 0.0
    %483 = vmatprep.subr.mxu0 0.0
    %484 = vmatpush1.msra.mxu0 0.0
    %485 = vmatprep.subr.mxu0 0.0
    %486 = vmatpush1.msra.mxu0 0.0
    %487 = vmatprep.subr.mxu0 0.0
    %488 = vmatpush1.msra.mxu0 0.0
    %489 = vmatprep.subr.mxu0 0.0
    %490 = vmatpush1.msra.mxu0 0.0
    %491 = vmatprep.subr.mxu0 0.0
    %492 = vmatpush1.msra.mxu0 0.0
    %493 = vmatprep.subr.mxu0 0.0
    %494 = vmatpush1.msra.mxu0 0.0
    %495 = vmatprep.subr.mxu0 0.0
    %496 = vmatpush1.msra.mxu0 0.0
    %497 = vmatprep.subr.mxu0 0.0
    %498 = vmatpush1.msra.mxu0 0.0
    %499 = vmatprep.subr.mxu0 0.0
    %500 = vmatpush1.msra.mxu0 0.0
    %501 = vmatprep.subr.mxu0 0.0
    %502 = vmatpush1.msra.mxu0 0.0
    %503 = vmatprep.subr.mxu0 0.0
    %504 = vmatpush1.msra.mxu0 0.0
    %505 = vmatprep.subr.mxu0 0.0
    %506 = vmatpush1.msra.mxu0 0.0
    %507 = vmatprep.mubr.f32.mxu0 0.0
    %508 = vmatmul.mubr.f32.gmra.mrb[0].mxu0 %v432
    %v509 = vpop.f32.mrb[0].mxu0
    %v510 = vadd.f32 0.0, %v509
    %v511 = vpop.f32.mrb[0].mxu0
    %512 = vmatprep.mubr.f32.mxu0 0.0
    %513 = vmatmul.mubr.f32.gmra.mrb[0].mxu0 %v434
    %v514 = vpop.f32.mrb[0].mxu0
    %v515 = vadd.f32 0.0, %v514
    %v516 = vpop.f32.mrb[0].mxu0
    %517 = vmatprep.mubr.f32.mxu0 0.0
    %518 = vmatmul.mubr.f32.gmra.mrb[0].mxu0 %v436
    %v519 = vpop.f32.mrb[0].mxu0
    %v520 = vadd.f32 0.0, %v519
    %v521 = vpop.f32.mrb[0].mxu0
    %522 = vmatprep.mubr.f32.mxu0 0.0
    %523 = vmatmul.mubr.f32.gmra.mrb[0].mxu0 %v438
    %v524 = vpop.f32.mrb[0].mxu0
    %v525 = vadd.f32 0.0, %v524
    %v526 = vpop.f32.mrb[0].mxu0
    %527 = vdwg.mxu0
    %v529 = vsel %vm431, %v414, 0
    %v531 = vsel %vm431, %v408, 0
    %v534 = vsel %vm431, %v415, 0
    %v536 = vsel %vm431, %v411, 0
    %v539 = vsel %vm92, %v427, 0
    %541 = vmatprep.subr.mxu0 0.0
    %542 = vmatpush1.msra.mxu0 %v426
    %543 = vmatprep.subr.mxu0 0.0
    %544 = vmatpush1.msra.mxu0 %v539
    %545 = vmatprep.subr.mxu0 0.0
    %546 = vmatpush1.msra.mxu0 0.0
    %547 = vmatprep.subr.mxu0 0.0
    %548 = vmatpush1.msra.mxu0 0.0
    %549 = vmatprep.subr.mxu0 0.0
    %550 = vmatpush1.msra.mxu0 0.0
    %551 = vmatprep.subr.mxu0 0.0
    %552 = vmatpush1.msra.mxu0 0.0
    %553 = vmatprep.subr.mxu0 0.0
    %554 = vmatpush1.msra.mxu0 0.0
    %555 = vmatprep.subr.mxu0 0.0
    %556 = vmatpush1.msra.mxu0 0.0
    %557 = vmatprep.subr.mxu0 0.0
    %558 = vmatpush1.msra.mxu0 0.0
    %559 = vmatprep.subr.mxu0 0.0
    %560 = vmatpush1.msra.mxu0 0.0
    %561 = vmatprep.subr.mxu0 0.0
    %562 = vmatpush1.msra.mxu0 0.0
    %563 = vmatprep.subr.mxu0 0.0
    %564 = vmatpush1.msra.mxu0 0.0
    %565 = vmatprep.subr.mxu0 0.0
    %566 = vmatpush1.msra.mxu0 0.0
    %567 = vmatprep.subr.mxu0 0.0
    %568 = vmatpush1.msra.mxu0 0.0
    %569 = vmatprep.subr.mxu0 0.0
    %570 = vmatpush1.msra.mxu0 0.0
    %571 = vmatprep.subr.mxu0 0.0
    %572 = vmatpush1.msra.mxu0 0.0
    %573 = vmatprep.subr.mxu0 0.0
    %574 = vmatpush1.msra.mxu0 0.0
    %575 = vmatprep.subr.mxu0 0.0
    %576 = vmatpush1.msra.mxu0 0.0
    %577 = vmatprep.subr.mxu0 0.0
    %578 = vmatpush1.msra.mxu0 0.0
    %579 = vmatprep.subr.mxu0 0.0
    %580 = vmatpush1.msra.mxu0 0.0
    %581 = vmatprep.subr.mxu0 0.0
    %582 = vmatpush1.msra.mxu0 0.0
    %583 = vmatprep.subr.mxu0 0.0
    %584 = vmatpush1.msra.mxu0 0.0
    %585 = vmatprep.subr.mxu0 0.0
    %586 = vmatpush1.msra.mxu0 0.0
    %587 = vmatprep.subr.mxu0 0.0
    %588 = vmatpush1.msra.mxu0 0.0
    %589 = vmatprep.subr.mxu0 0.0
    %590 = vmatpush1.msra.mxu0 0.0
    %591 = vmatprep.subr.mxu0 0.0
    %592 = vmatpush1.msra.mxu0 0.0
    %593 = vmatprep.subr.mxu0 0.0
    %594 = vmatpush1.msra.mxu0 0.0
    %595 = vmatprep.subr.mxu0 0.0
    %596 = vmatpush1.msra.mxu0 0.0
    %597 = vmatprep.subr.mxu0 0.0
    %598 = vmatpush1.msra.mxu0 0.0
    %599 = vmatprep.subr.mxu0 0.0
    %600 = vmatpush1.msra.mxu0 0.0
    %601 = vmatprep.subr.mxu0 0.0
    %602 = vmatpush1.msra.mxu0 0.0
    %603 = vmatprep.subr.mxu0 0.0
    %604 = vmatpush1.msra.mxu0 0.0
    %605 = vmatprep.mubr.f32.mxu0 0.0
    %606 = vmatmul.mubr.f32.gmra.mrb[0].mxu0 %v529
    %v607 = vpop.f32.mrb[0].mxu0
    %v608 = vadd.f32 %v510, %v607
    %v609 = vpop.f32.mrb[0].mxu0
    %610 = vmatprep.mubr.f32.mxu0 0.0
    %611 = vmatmul.mubr.f32.gmra.mrb[0].mxu0 %v531
    %v612 = vpop.f32.mrb[0].mxu0
    %v613 = vadd.f32 %v515, %v612
    %v614 = vpop.f32.mrb[0].mxu0
    %615 = vmatprep.mubr.f32.mxu0 0.0
    %616 = vmatmul.mubr.f32.gmra.mrb[0].mxu0 %v534
    %v617 = vpop.f32.mrb[0].mxu0
    %v618 = vadd.f32 %v520, %v617
    %v619 = vpop.f32.mrb[0].mxu0
    %620 = vmatprep.mubr.f32.mxu0 0.0
    %621 = vmatmul.mubr.f32.gmra.mrb[0].mxu0 %v536
    %v622 = vpop.f32.mrb[0].mxu0
    %v623 = vadd.f32 %v525, %v622
    %v624 = vpop.f32.mrb[0].mxu0
    %625 = vdwg.mxu0
    %s626 = scalar_lea.vmem %s2, 32
    %v627 = vld [vmem:[%s626] sm:$0xff]
    %v628 = vld [vmem:[%s626 + $0x8] sm:$0xf]
    %v629 = vsel %vm431, %v418, 0
    %v632 = vsel %vm431, %v424, 0
    %v634 = vsel %vm431, %v421, 0
    %v637 = vsel %vm431, %v425, 0
    %v640 = vsel %vm92, %v628, 0
    %642 = vmatprep.subr.mxu0 0.0
    %643 = vmatpush1.msra.mxu0 %v627
    %644 = vmatprep.subr.mxu0 0.0
    %645 = vmatpush1.msra.mxu0 %v640
    %646 = vmatprep.subr.mxu0 0.0
    %647 = vmatpush1.msra.mxu0 0.0
    %648 = vmatprep.subr.mxu0 0.0
    %649 = vmatpush1.msra.mxu0 0.0
    %650 = vmatprep.subr.mxu0 0.0
    %651 = vmatpush1.msra.mxu0 0.0
    %652 = vmatprep.subr.mxu0 0.0
    %653 = vmatpush1.msra.mxu0 0.0
    %654 = vmatprep.subr.mxu0 0.0
    %655 = vmatpush1.msra.mxu0 0.0
    %656 = vmatprep.subr.mxu0 0.0
    %657 = vmatpush1.msra.mxu0 0.0
    %658 = vmatprep.subr.mxu0 0.0
    %659 = vmatpush1.msra.mxu0 0.0
    %660 = vmatprep.subr.mxu0 0.0
    %661 = vmatpush1.msra.mxu0 0.0
    %662 = vmatprep.subr.mxu0 0.0
    %663 = vmatpush1.msra.mxu0 0.0
    %664 = vmatprep.subr.mxu0 0.0
    %665 = vmatpush1.msra.mxu0 0.0
    %666 = vmatprep.subr.mxu0 0.0
    %667 = vmatpush1.msra.mxu0 0.0
    %668 = vmatprep.subr.mxu0 0.0
    %669 = vmatpush1.msra.mxu0 0.0
    %670 = vmatprep.subr.mxu0 0.0
    %671 = vmatpush1.msra.mxu0 0.0
    %672 = vmatprep.subr.mxu0 0.0
    %673 = vmatpush1.msra.mxu0 0.0
    %674 = vmatprep.subr.mxu0 0.0
    %675 = vmatpush1.msra.mxu0 0.0
    %676 = vmatprep.subr.mxu0 0.0
    %677 = vmatpush1.msra.mxu0 0.0
    %678 = vmatprep.subr.mxu0 0.0
    %679 = vmatpush1.msra.mxu0 0.0
    %680 = vmatprep.subr.mxu0 0.0
    %681 = vmatpush1.msra.mxu0 0.0
    %682 = vmatprep.subr.mxu0 0.0
    %683 = vmatpush1.msra.mxu0 0.0
    %684 = vmatprep.subr.mxu0 0.0
    %685 = vmatpush1.msra.mxu0 0.0
    %686 = vmatprep.subr.mxu0 0.0
    %687 = vmatpush1.msra.mxu0 0.0
    %688 = vmatprep.subr.mxu0 0.0
    %689 = vmatpush1.msra.mxu0 0.0
    %690 = vmatprep.subr.mxu0 0.0
    %691 = vmatpush1.msra.mxu0 0.0
    %692 = vmatprep.subr.mxu0 0.0
    %693 = vmatpush1.msra.mxu0 0.0
    %694 = vmatprep.subr.mxu0 0.0
    %695 = vmatpush1.msra.mxu0 0.0
    %696 = vmatprep.subr.mxu0 0.0
    %697 = vmatpush1.msra.mxu0 0.0
    %698 = vmatprep.subr.mxu0 0.0
    %699 = vmatpush1.msra.mxu0 0.0
    %700 = vmatprep.subr.mxu0 0.0
    %701 = vmatpush1.msra.mxu0 0.0
    %702 = vmatprep.subr.mxu0 0.0
    %703 = vmatpush1.msra.mxu0 0.0
    %704 = vmatprep.subr.mxu0 0.0
    %705 = vmatpush1.msra.mxu0 0.0
    %706 = vmatprep.mubr.f32.mxu0 0.0
    %707 = vmatmul.mubr.f32.gmra.mrb[0].mxu0 %v629
    %v708 = vpop.f32.mrb[0].mxu0
    %v709 = vadd.f32 0.0, %v708
    %v710 = vpop.f32.mrb[0].mxu0
    %711 = vmatprep.mubr.f32.mxu0 0.0
    %712 = vmatmul.mubr.f32.gmra.mrb[0].mxu0 %v632
    %v713 = vpop.f32.mrb[0].mxu0
    %v714 = vadd.f32 0.0, %v713
    %v715 = vpop.f32.mrb[0].mxu0
    %716 = vmatprep.mubr.f32.mxu0 0.0
    %717 = vmatmul.mubr.f32.gmra.mrb[0].mxu0 %v634
    %v718 = vpop.f32.mrb[0].mxu0
    %v719 = vadd.f32 0.0, %v718
    %v720 = vpop.f32.mrb[0].mxu0
    %721 = vmatprep.mubr.f32.mxu0 0.0
    %722 = vmatmul.mubr.f32.gmra.mrb[0].mxu0 %v637
    %v723 = vpop.f32.mrb[0].mxu0
    %v724 = vadd.f32 0.0, %v723
    %v725 = vpop.f32.mrb[0].mxu0
    %726 = vdwg.mxu0
    %v727 = vadd.f32 %v608, %v709
    %v728 = vadd.f32 %v613, %v714
    %v729 = vadd.f32 %v618, %v719
    %v730 = vadd.f32 %v623, %v724
    %v731 = vld [vmem:[%s3] sm:$0x1]
    %v733 = vlaneseq
    %v734 = vshrl.u32 %v733, 7
    %v735 = vsub.s32 0, %v734
    %v736 = vrot.slane %v731, %v735
    %v738 = vadd.f32 %v727, %v736
    %v739 = vadd.f32 %v728, %v736
    %v740 = vadd.f32 %v729, %v736
    %v741 = vadd.f32 %v730, %v736
    %v742 = vmul.f32 %v738, 0.1
    %v743 = vmul.f32 %v739, 0.1
    %v744 = vmul.f32 %v740, 0.1
    %v745 = vmul.f32 %v741, 0.1
    %v746 = vmax.f32 %v738, %v742
    %v747 = vmax.f32 %v739, %v743
    %v748 = vmax.f32 %v740, %v744
    %v749 = vmax.f32 %v741, %v745
    %v754 = vrot.slane %v746, 7
    %v755 = vrot.slane %v747, 7
    %v756 = vsel %vm58, %v754, %v755
    %v757 = vrot.slane %v748, 7
    %v758 = vrot.slane %v749, 7
    %v759 = vsel %vm58, %v757, %v758
    %v762 = vsel %vm58, 0.0, %v754
    %v763 = vsel %vm58, 0.0, %v757
    %v764 = vrot.slane %v746, 1
    %v765 = vrot.slane %v747, 1
    %v766 = vsel %vm69, %v764, %v765
    %v767 = vrot.slane %v748, 1
    %v768 = vrot.slane %v749, 1
    %v769 = vsel %vm69, %v767, %v768
    %v772 = vsel %vm69, %v765, 0.0
    %v773 = vsel %vm69, %v768, 0.0
    %v774 = vld [vmem:[%s4] sm:$0xff]
    %v775 = vld [vmem:[%s4 + $0x8] sm:$0xf]
    %s776 = scalar_lea.vmem %s4, 16
    %v777 = vld [vmem:[%s776] sm:$0xff]
    %v778 = vld [vmem:[%s776 + $0x8] sm:$0xf]
    %v779 = vsel %vm431, %v746, 0
    %v781 = vsel %vm431, %v747, 0
    %v783 = vsel %vm431, %v748, 0
    %v785 = vsel %vm431, %v749, 0
    %v788 = vsel %vm92, %v778, 0
    %790 = vmatprep.subr.mxu0 0.0
    %791 = vmatpush1.msra.mxu0 %v777
    %792 = vmatprep.subr.mxu0 0.0
    %793 = vmatpush1.msra.mxu0 %v788
    %794 = vmatprep.subr.mxu0 0.0
    %795 = vmatpush1.msra.mxu0 0.0
    %796 = vmatprep.subr.mxu0 0.0
    %797 = vmatpush1.msra.mxu0 0.0
    %798 = vmatprep.subr.mxu0 0.0
    %799 = vmatpush1.msra.mxu0 0.0
    %800 = vmatprep.subr.mxu0 0.0
    %801 = vmatpush1.msra.mxu0 0.0
    %802 = vmatprep.subr.mxu0 0.0
    %803 = vmatpush1.msra.mxu0 0.0
    %804 = vmatprep.subr.mxu0 0.0
    %805 = vmatpush1.msra.mxu0 0.0
    %806 = vmatprep.subr.mxu0 0.0
    %807 = vmatpush1.msra.mxu0 0.0
    %808 = vmatprep.subr.mxu0 0.0
    %809 = vmatpush1.msra.mxu0 0.0
    %810 = vmatprep.subr.mxu0 0.0
    %811 = vmatpush1.msra.mxu0 0.0
    %812 = vmatprep.subr.mxu0 0.0
    %813 = vmatpush1.msra.mxu0 0.0
    %814 = vmatprep.subr.mxu0 0.0
    %815 = vmatpush1.msra.mxu0 0.0
    %816 = vmatprep.subr.mxu0 0.0
    %817 = vmatpush1.msra.mxu0 0.0
    %818 = vmatprep.subr.mxu0 0.0
    %819 = vmatpush1.msra.mxu0 0.0
    %820 = vmatprep.subr.mxu0 0.0
    %821 = vmatpush1.msra.mxu0 0.0
    %822 = vmatprep.subr.mxu0 0.0
    %823 = vmatpush1.msra.mxu0 0.0
    %824 = vmatprep.subr.mxu0 0.0
    %825 = vmatpush1.msra.mxu0 0.0
    %826 = vmatprep.subr.mxu0 0.0
    %827 = vmatpush1.msra.mxu0 0.0
    %828 = vmatprep.subr.mxu0 0.0
    %829 = vmatpush1.msra.mxu0 0.0
    %830 = vmatprep.subr.mxu0 0.0
    %831 = vmatpush1.msra.mxu0 0.0
    %832 = vmatprep.subr.mxu0 0.0
    %833 = vmatpush1.msra.mxu0 0.0
    %834 = vmatprep.subr.mxu0 0.0
    %835 = vmatpush1.msra.mxu0 0.0
    %836 = vmatprep.subr.mxu0 0.0
    %837 = vmatpush1.msra.mxu0 0.0
    %838 = vmatprep.subr.mxu0 0.0
    %839 = vmatpush1.msra.mxu0 0.0
    %840 = vmatprep.subr.mxu0 0.0
    %841 = vmatpush1.msra.mxu0 0.0
    %842 = vmatprep.subr.mxu0 0.0
    %843 = vmatpush1.msra.mxu0 0.0
    %844 = vmatprep.subr.mxu0 0.0
    %845 = vmatpush1.msra.mxu0 0.0
    %846 = vmatprep.subr.mxu0 0.0
    %847 = vmatpush1.msra.mxu0 0.0
    %848 = vmatprep.subr.mxu0 0.0
    %849 = vmatpush1.msra.mxu0 0.0
    %850 = vmatprep.subr.mxu0 0.0
    %851 = vmatpush1.msra.mxu0 0.0
    %852 = vmatprep.subr.mxu0 0.0
    %853 = vmatpush1.msra.mxu0 0.0
    %854 = vmatprep.mubr.f32.mxu0 0.0
    %855 = vmatmul.mubr.f32.gmra.mrb[0].mxu0 %v779
    %v856 = vpop.f32.mrb[0].mxu0
    %v857 = vadd.f32 0.0, %v856
    %v858 = vpop.f32.mrb[0].mxu0
    %859 = vmatprep.mubr.f32.mxu0 0.0
    %860 = vmatmul.mubr.f32.gmra.mrb[0].mxu0 %v781
    %v861 = vpop.f32.mrb[0].mxu0
    %v862 = vadd.f32 0.0, %v861
    %v863 = vpop.f32.mrb[0].mxu0
    %864 = vmatprep.mubr.f32.mxu0 0.0
    %865 = vmatmul.mubr.f32.gmra.mrb[0].mxu0 %v783
    %v866 = vpop.f32.mrb[0].mxu0
    %v867 = vadd.f32 0.0, %v866
    %v868 = vpop.f32.mrb[0].mxu0
    %869 = vmatprep.mubr.f32.mxu0 0.0
    %870 = vmatmul.mubr.f32.gmra.mrb[0].mxu0 %v785
    %v871 = vpop.f32.mrb[0].mxu0
    %v872 = vadd.f32 0.0, %v871
    %v873 = vpop.f32.mrb[0].mxu0
    %874 = vdwg.mxu0
    %v876 = vsel %vm431, %v762, 0
    %v878 = vsel %vm431, %v756, 0
    %v881 = vsel %vm431, %v763, 0
    %v883 = vsel %vm431, %v759, 0
    %v886 = vsel %vm92, %v775, 0
    %888 = vmatprep.subr.mxu0 0.0
    %889 = vmatpush1.msra.mxu0 %v774
    %890 = vmatprep.subr.mxu0 0.0
    %891 = vmatpush1.msra.mxu0 %v886
    %892 = vmatprep.subr.mxu0 0.0
    %893 = vmatpush1.msra.mxu0 0.0
    %894 = vmatprep.subr.mxu0 0.0
    %895 = vmatpush1.msra.mxu0 0.0
    %896 = vmatprep.subr.mxu0 0.0
    %897 = vmatpush1.msra.mxu0 0.0
    %898 = vmatprep.subr.mxu0 0.0
    %899 = vmatpush1.msra.mxu0 0.0
    %900 = vmatprep.subr.mxu0 0.0
    %901 = vmatpush1.msra.mxu0 0.0
    %902 = vmatprep.subr.mxu0 0.0
    %903 = vmatpush1.msra.mxu0 0.0
    %904 = vmatprep.subr.mxu0 0.0
    %905 = vmatpush1.msra.mxu0 0.0
    %906 = vmatprep.subr.mxu0 0.0
    %907 = vmatpush1.msra.mxu0 0.0
    %908 = vmatprep.subr.mxu0 0.0
    %909 = vmatpush1.msra.mxu0 0.0
    %910 = vmatprep.subr.mxu0 0.0
    %911 = vmatpush1.msra.mxu0 0.0
    %912 = vmatprep.subr.mxu0 0.0
    %913 = vmatpush1.msra.mxu0 0.0
    %914 = vmatprep.subr.mxu0 0.0
    %915 = vmatpush1.msra.mxu0 0.0
    %916 = vmatprep.subr.mxu0 0.0
    %917 = vmatpush1.msra.mxu0 0.0
    %918 = vmatprep.subr.mxu0 0.0
    %919 = vmatpush1.msra.mxu0 0.0
    %920 = vmatprep.subr.mxu0 0.0
    %921 = vmatpush1.msra.mxu0 0.0
    %922 = vmatprep.subr.mxu0 0.0
    %923 = vmatpush1.msra.mxu0 0.0
    %924 = vmatprep.subr.mxu0 0.0
    %925 = vmatpush1.msra.mxu0 0.0
    %926 = vmatprep.subr.mxu0 0.0
    %927 = vmatpush1.msra.mxu0 0.0
    %928 = vmatprep.subr.mxu0 0.0
    %929 = vmatpush1.msra.mxu0 0.0
    %930 = vmatprep.subr.mxu0 0.0
    %931 = vmatpush1.msra.mxu0 0.0
    %932 = vmatprep.subr.mxu0 0.0
    %933 = vmatpush1.msra.mxu0 0.0
    %934 = vmatprep.subr.mxu0 0.0
    %935 = vmatpush1.msra.mxu0 0.0
    %936 = vmatprep.subr.mxu0 0.0
    %937 = vmatpush1.msra.mxu0 0.0
    %938 = vmatprep.subr.mxu0 0.0
    %939 = vmatpush1.msra.mxu0 0.0
    %940 = vmatprep.subr.mxu0 0.0
    %941 = vmatpush1.msra.mxu0 0.0
    %942 = vmatprep.subr.mxu0 0.0
    %943 = vmatpush1.msra.mxu0 0.0
    %944 = vmatprep.subr.mxu0 0.0
    %945 = vmatpush1.msra.mxu0 0.0
    %946 = vmatprep.subr.mxu0 0.0
    %947 = vmatpush1.msra.mxu0 0.0
    %948 = vmatprep.subr.mxu0 0.0
    %949 = vmatpush1.msra.mxu0 0.0
    %950 = vmatprep.subr.mxu0 0.0
    %951 = vmatpush1.msra.mxu0 0.0
    %952 = vmatprep.mubr.f32.mxu0 0.0
    %953 = vmatmul.mubr.f32.gmra.mrb[0].mxu0 %v876
    %v954 = vpop.f32.mrb[0].mxu0
    %v955 = vadd.f32 %v857, %v954
    %v956 = vpop.f32.mrb[0].mxu0
    %957 = vmatprep.mubr.f32.mxu0 0.0
    %958 = vmatmul.mubr.f32.gmra.mrb[0].mxu0 %v878
    %v959 = vpop.f32.mrb[0].mxu0
    %v960 = vadd.f32 %v862, %v959
    %v961 = vpop.f32.mrb[0].mxu0
    %962 = vmatprep.mubr.f32.mxu0 0.0
    %963 = vmatmul.mubr.f32.gmra.mrb[0].mxu0 %v881
    %v964 = vpop.f32.mrb[0].mxu0
    %v965 = vadd.f32 %v867, %v964
    %v966 = vpop.f32.mrb[0].mxu0
    %967 = vmatprep.mubr.f32.mxu0 0.0
    %968 = vmatmul.mubr.f32.gmra.mrb[0].mxu0 %v883
    %v969 = vpop.f32.mrb[0].mxu0
    %v970 = vadd.f32 %v872, %v969
    %v971 = vpop.f32.mrb[0].mxu0
    %972 = vdwg.mxu0
    %s973 = scalar_lea.vmem %s4, 32
    %v974 = vld [vmem:[%s973] sm:$0xff]
    %v975 = vld [vmem:[%s973 + $0x8] sm:$0xf]
    %v976 = vsel %vm431, %v766, 0
    %v979 = vsel %vm431, %v772, 0
    %v981 = vsel %vm431, %v769, 0
    %v984 = vsel %vm431, %v773, 0
    %v987 = vsel %vm92, %v975, 0
    %989 = vmatprep.subr.mxu0 0.0
    %990 = vmatpush1.msra.mxu0 %v974
    %991 = vmatprep.subr.mxu0 0.0
    %992 = vmatpush1.msra.mxu0 %v987
    %993 = vmatprep.subr.mxu0 0.0
    %994 = vmatpush1.msra.mxu0 0.0
    %995 = vmatprep.subr.mxu0 0.0
    %996 = vmatpush1.msra.mxu0 0.0
    %997 = vmatprep.subr.mxu0 0.0
    %998 = vmatpush1.msra.mxu0 0.0
    %999 = vmatprep.subr.mxu0 0.0
    %1000 = vmatpush1.msra.mxu0 0.0
    %1001 = vmatprep.subr.mxu0 0.0
    %1002 = vmatpush1.msra.mxu0 0.0
    %1003 = vmatprep.subr.mxu0 0.0
    %1004 = vmatpush1.msra.mxu0 0.0
    %1005 = vmatprep.subr.mxu0 0.0
    %1006 = vmatpush1.msra.mxu0 0.0
    %1007 = vmatprep.subr.mxu0 0.0
    %1008 = vmatpush1.msra.mxu0 0.0
    %1009 = vmatprep.subr.mxu0 0.0
    %1010 = vmatpush1.msra.mxu0 0.0
    %1011 = vmatprep.subr.mxu0 0.0
    %1012 = vmatpush1.msra.mxu0 0.0
    %1013 = vmatprep.subr.mxu0 0.0
    %1014 = vmatpush1.msra.mxu0 0.0
    %1015 = vmatprep.subr.mxu0 0.0
    %1016 = vmatpush1.msra.mxu0 0.0
    %1017 = vmatprep.subr.mxu0 0.0
    %1018 = vmatpush1.msra.mxu0 0.0
    %1019 = vmatprep.subr.mxu0 0.0
    %1020 = vmatpush1.msra.mxu0 0.0
    %1021 = vmatprep.subr.mxu0 0.0
    %1022 = vmatpush1.msra.mxu0 0.0
    %1023 = vmatprep.subr.mxu0 0.0
    %1024 = vmatpush1.msra.mxu0 0.0
    %1025 = vmatprep.subr.mxu0 0.0
    %1026 = vmatpush1.msra.mxu0 0.0
    %1027 = vmatprep.subr.mxu0 0.0
    %1028 = vmatpush1.msra.mxu0 0.0
    %1029 = vmatprep.subr.mxu0 0.0
    %1030 = vmatpush1.msra.mxu0 0.0
    %1031 = vmatprep.subr.mxu0 0.0
    %1032 = vmatpush1.msra.mxu0 0.0
    %1033 = vmatprep.subr.mxu0 0.0
    %1034 = vmatpush1.msra.mxu0 0.0
    %1035 = vmatprep.subr.mxu0 0.0
    %1036 = vmatpush1.msra.mxu0 0.0
    %1037 = vmatprep.subr.mxu0 0.0
    %1038 = vmatpush1.msra.mxu0 0.0
    %1039 = vmatprep.subr.mxu0 0.0
    %1040 = vmatpush1.msra.mxu0 0.0
    %1041 = vmatprep.subr.mxu0 0.0
    %1042 = vmatpush1.msra.mxu0 0.0
    %1043 = vmatprep.subr.mxu0 0.0
    %1044 = vmatpush1.msra.mxu0 0.0
    %1045 = vmatprep.subr.mxu0 0.0
    %1046 = vmatpush1.msra.mxu0 0.0
    %1047 = vmatprep.subr.mxu0 0.0
    %1048 = vmatpush1.msra.mxu0 0.0
    %1049 = vmatprep.subr.mxu0 0.0
    %1050 = vmatpush1.msra.mxu0 0.0
    %1051 = vmatprep.subr.mxu0 0.0
    %1052 = vmatpush1.msra.mxu0 0.0
    %1053 = vmatprep.mubr.f32.mxu0 0.0
    %1054 = vmatmul.mubr.f32.gmra.mrb[0].mxu0 %v976
    %v1055 = vpop.f32.mrb[0].mxu0
    %v1056 = vadd.f32 0.0, %v1055
    %v1057 = vpop.f32.mrb[0].mxu0
    %1058 = vmatprep.mubr.f32.mxu0 0.0
    %1059 = vmatmul.mubr.f32.gmra.mrb[0].mxu0 %v979
    %v1060 = vpop.f32.mrb[0].mxu0
    %v1061 = vadd.f32 0.0, %v1060
    %v1062 = vpop.f32.mrb[0].mxu0
    %1063 = vmatprep.mubr.f32.mxu0 0.0
    %1064 = vmatmul.mubr.f32.gmra.mrb[0].mxu0 %v981
    %v1065 = vpop.f32.mrb[0].mxu0
    %v1066 = vadd.f32 0.0, %v1065
    %v1067 = vpop.f32.mrb[0].mxu0
    %1068 = vmatprep.mubr.f32.mxu0 0.0
    %1069 = vmatmul.mubr.f32.gmra.mrb[0].mxu0 %v984
    %v1070 = vpop.f32.mrb[0].mxu0
    %v1071 = vadd.f32 0.0, %v1070
    %v1072 = vpop.f32.mrb[0].mxu0
    %1073 = vdwg.mxu0
    %v1074 = vadd.f32 %v955, %v1056
    %v1075 = vadd.f32 %v960, %v1061
    %v1076 = vadd.f32 %v965, %v1066
    %v1077 = vadd.f32 %v970, %v1071
    %v1078 = vld [vmem:[%s5] sm:$0x1]
    %v1080 = vlaneseq
    %v1081 = vshrl.u32 %v1080, 7
    %v1082 = vsub.s32 0, %v1081
    %v1083 = vrot.slane %v1078, %v1082
    %v1085 = vadd.f32 %v1074, %v1083
    %v1086 = vadd.f32 %v1075, %v1083
    %v1087 = vadd.f32 %v1076, %v1083
    %v1088 = vadd.f32 %v1077, %v1083
    %v1089 = vmul.f32 %v1085, 0.1
    %v1090 = vmul.f32 %v1086, 0.1
    %v1091 = vmul.f32 %v1087, 0.1
    %v1092 = vmul.f32 %v1088, 0.1
    %v1093 = vmax.f32 %v1085, %v1089
    %v1094 = vmax.f32 %v1086, %v1090
    %v1095 = vmax.f32 %v1087, %v1091
    %v1096 = vmax.f32 %v1088, %v1092
    %v1097 = vld [vmem:[%s7] sm:$0x1]
    %v1098 = vld [vmem:[%s6] sm:$0xff]
    %v1099 = vld [vmem:[%s6 + $0x8] sm:$0xf]
    %v1102 = vrot.slane %v1095, 7
    %vm1103 = vcmask 1041409
    %v1104 = vsel %vm1103, %v1102, %v1093
    %v1105 = vsel %vm431, %v1104, 0
    %v1108 = vsel %vm92, %v1099, 0
    %1110 = vmatprep.subr.mxu0 0.0
    %1111 = vmatpush1.msra.mxu0 %v1098
    %1112 = vmatprep.subr.mxu0 0.0
    %1113 = vmatpush1.msra.mxu0 %v1108
    %1114 = vmatprep.subr.mxu0 0.0
    %1115 = vmatpush1.msra.mxu0 0.0
    %1116 = vmatprep.subr.mxu0 0.0
    %1117 = vmatpush1.msra.mxu0 0.0
    %1118 = vmatprep.subr.mxu0 0.0
    %1119 = vmatpush1.msra.mxu0 0.0
    %1120 = vmatprep.subr.mxu0 0.0
    %1121 = vmatpush1.msra.mxu0 0.0
    %1122 = vmatprep.subr.mxu0 0.0
    %1123 = vmatpush1.msra.mxu0 0.0
    %1124 = vmatprep.subr.mxu0 0.0
    %1125 = vmatpush1.msra.mxu0 0.0
    %1126 = vmatprep.subr.mxu0 0.0
    %1127 = vmatpush1.msra.mxu0 0.0
    %1128 = vmatprep.subr.mxu0 0.0
    %1129 = vmatpush1.msra.mxu0 0.0
    %1130 = vmatprep.subr.mxu0 0.0
    %1131 = vmatpush1.msra.mxu0 0.0
    %1132 = vmatprep.subr.mxu0 0.0
    %1133 = vmatpush1.msra.mxu0 0.0
    %1134 = vmatprep.subr.mxu0 0.0
    %1135 = vmatpush1.msra.mxu0 0.0
    %1136 = vmatprep.subr.mxu0 0.0
    %1137 = vmatpush1.msra.mxu0 0.0
    %1138 = vmatprep.subr.mxu0 0.0
    %1139 = vmatpush1.msra.mxu0 0.0
    %1140 = vmatprep.subr.mxu0 0.0
    %1141 = vmatpush1.msra.mxu0 0.0
    %1142 = vmatprep.subr.mxu0 0.0
    %1143 = vmatpush1.msra.mxu0 0.0
    %1144 = vmatprep.subr.mxu0 0.0
    %1145 = vmatpush1.msra.mxu0 0.0
    %1146 = vmatprep.subr.mxu0 0.0
    %1147 = vmatpush1.msra.mxu0 0.0
    %1148 = vmatprep.subr.mxu0 0.0
    %1149 = vmatpush1.msra.mxu0 0.0
    %1150 = vmatprep.subr.mxu0 0.0
    %1151 = vmatpush1.msra.mxu0 0.0
    %1152 = vmatprep.subr.mxu0 0.0
    %1153 = vmatpush1.msra.mxu0 0.0
    %1154 = vmatprep.subr.mxu0 0.0
    %1155 = vmatpush1.msra.mxu0 0.0
    %1156 = vmatprep.subr.mxu0 0.0
    %1157 = vmatpush1.msra.mxu0 0.0
    %1158 = vmatprep.subr.mxu0 0.0
    %1159 = vmatpush1.msra.mxu0 0.0
    %1160 = vmatprep.subr.mxu0 0.0
    %1161 = vmatpush1.msra.mxu0 0.0
    %1162 = vmatprep.subr.mxu0 0.0
    %1163 = vmatpush1.msra.mxu0 0.0
    %1164 = vmatprep.subr.mxu0 0.0
    %1165 = vmatpush1.msra.mxu0 0.0
    %1166 = vmatprep.subr.mxu0 0.0
    %1167 = vmatpush1.msra.mxu0 0.0
    %1168 = vmatprep.subr.mxu0 0.0
    %1169 = vmatpush1.msra.mxu0 0.0
    %1170 = vmatprep.subr.mxu0 0.0
    %1171 = vmatpush1.msra.mxu0 0.0
    %1172 = vmatprep.subr.mxu0 0.0
    %1173 = vmatpush1.msra.mxu0 0.0
    %1174 = vmatprep.mubr.f32.mxu0 0.0
    %1175 = vmatmul.mubr.f32.gmra.mrb[0].mxu0 %v1105
    %v1176 = vpop.f32.mrb[0].mxu0
    %v1177 = vadd.f32 0.0, %v1176
    %v1178 = vpop.f32.mrb[0].mxu0
    %1179 = vdwg.mxu0
    %v1181 = vlaneseq
    %v1182 = vshrl.u32 %v1181, 7
    %v1183 = vsub.s32 0, %v1182
    %v1184 = vrot.slane %v1097, %v1183
    %v1186 = vadd.f32 %v1184, %v1177
    %s1187 = scalar_lea.vmem %s6, 16
    %v1188 = vld [vmem:[%s1187] sm:$0xff]
    %v1189 = vld [vmem:[%s1187 + $0x8] sm:$0xf]
    %v1190 = vrot.slane %v1093, 1
    %v1191 = vsel %vm1103, %v1095, %v1190
    %v1192 = vsel %vm431, %v1191, 0
    %v1195 = vsel %vm92, %v1189, 0
    %1197 = vmatprep.subr.mxu0 0.0
    %1198 = vmatpush1.msra.mxu0 %v1188
    %1199 = vmatprep.subr.mxu0 0.0
    %1200 = vmatpush1.msra.mxu0 %v1195
    %1201 = vmatprep.subr.mxu0 0.0
    %1202 = vmatpush1.msra.mxu0 0.0
    %1203 = vmatprep.subr.mxu0 0.0
    %1204 = vmatpush1.msra.mxu0 0.0
    %1205 = vmatprep.subr.mxu0 0.0
    %1206 = vmatpush1.msra.mxu0 0.0
    %1207 = vmatprep.subr.mxu0 0.0
    %1208 = vmatpush1.msra.mxu0 0.0
    %1209 = vmatprep.subr.mxu0 0.0
    %1210 = vmatpush1.msra.mxu0 0.0
    %1211 = vmatprep.subr.mxu0 0.0
    %1212 = vmatpush1.msra.mxu0 0.0
    %1213 = vmatprep.subr.mxu0 0.0
    %1214 = vmatpush1.msra.mxu0 0.0
    %1215 = vmatprep.subr.mxu0 0.0
    %1216 = vmatpush1.msra.mxu0 0.0
    %1217 = vmatprep.subr.mxu0 0.0
    %1218 = vmatpush1.msra.mxu0 0.0
    %1219 = vmatprep.subr.mxu0 0.0
    %1220 = vmatpush1.msra.mxu0 0.0
    %1221 = vmatprep.subr.mxu0 0.0
    %1222 = vmatpush1.msra.mxu0 0.0
    %1223 = vmatprep.subr.mxu0 0.0
    %1224 = vmatpush1.msra.mxu0 0.0
    %1225 = vmatprep.subr.mxu0 0.0
    %1226 = vmatpush1.msra.mxu0 0.0
    %1227 = vmatprep.subr.mxu0 0.0
    %1228 = vmatpush1.msra.mxu0 0.0
    %1229 = vmatprep.subr.mxu0 0.0
    %1230 = vmatpush1.msra.mxu0 0.0
    %1231 = vmatprep.subr.mxu0 0.0
    %1232 = vmatpush1.msra.mxu0 0.0
    %1233 = vmatprep.subr.mxu0 0.0
    %1234 = vmatpush1.msra.mxu0 0.0
    %1235 = vmatprep.subr.mxu0 0.0
    %1236 = vmatpush1.msra.mxu0 0.0
    %1237 = vmatprep.subr.mxu0 0.0
    %1238 = vmatpush1.msra.mxu0 0.0
    %1239 = vmatprep.subr.mxu0 0.0
    %1240 = vmatpush1.msra.mxu0 0.0
    %1241 = vmatprep.subr.mxu0 0.0
    %1242 = vmatpush1.msra.mxu0 0.0
    %1243 = vmatprep.subr.mxu0 0.0
    %1244 = vmatpush1.msra.mxu0 0.0
    %1245 = vmatprep.subr.mxu0 0.0
    %1246 = vmatpush1.msra.mxu0 0.0
    %1247 = vmatprep.subr.mxu0 0.0
    %1248 = vmatpush1.msra.mxu0 0.0
    %1249 = vmatprep.subr.mxu0 0.0
    %1250 = vmatpush1.msra.mxu0 0.0
    %1251 = vmatprep.subr.mxu0 0.0
    %1252 = vmatpush1.msra.mxu0 0.0
    %1253 = vmatprep.subr.mxu0 0.0
    %1254 = vmatpush1.msra.mxu0 0.0
    %1255 = vmatprep.subr.mxu0 0.0
    %1256 = vmatpush1.msra.mxu0 0.0
    %1257 = vmatprep.subr.mxu0 0.0
    %1258 = vmatpush1.msra.mxu0 0.0
    %1259 = vmatprep.subr.mxu0 0.0
    %1260 = vmatpush1.msra.mxu0 0.0
    %1261 = vmatprep.mubr.f32.mxu0 0.0
    %1262 = vmatmul.mubr.f32.gmra.mrb[0].mxu0 %v1192
    %v1263 = vpop.f32.mrb[0].mxu0
    %v1264 = vadd.f32 0.0, %v1263
    %v1265 = vpop.f32.mrb[0].mxu0
    %1266 = vdwg.mxu0
    %v1267 = vadd.f32 %v1186, %v1264
    %s1268 = scalar_lea.vmem %s6, 32
    %v1269 = vld [vmem:[%s1268] sm:$0xff]
    %v1270 = vld [vmem:[%s1268 + $0x8] sm:$0xf]
    %v1271 = vrot.slane %v1093, 2
    %v1272 = vrot.slane %v1095, 1
    %v1273 = vsel %vm1103, %v1272, %v1271
    %v1274 = vsel %vm431, %v1273, 0
    %v1277 = vsel %vm92, %v1270, 0
    %1279 = vmatprep.subr.mxu0 0.0
    %1280 = vmatpush1.msra.mxu0 %v1269
    %1281 = vmatprep.subr.mxu0 0.0
    %1282 = vmatpush1.msra.mxu0 %v1277
    %1283 = vmatprep.subr.mxu0 0.0
    %1284 = vmatpush1.msra.mxu0 0.0
    %1285 = vmatprep.subr.mxu0 0.0
    %1286 = vmatpush1.msra.mxu0 0.0
    %1287 = vmatprep.subr.mxu0 0.0
    %1288 = vmatpush1.msra.mxu0 0.0
    %1289 = vmatprep.subr.mxu0 0.0
    %1290 = vmatpush1.msra.mxu0 0.0
    %1291 = vmatprep.subr.mxu0 0.0
    %1292 = vmatpush1.msra.mxu0 0.0
    %1293 = vmatprep.subr.mxu0 0.0
    %1294 = vmatpush1.msra.mxu0 0.0
    %1295 = vmatprep.subr.mxu0 0.0
    %1296 = vmatpush1.msra.mxu0 0.0
    %1297 = vmatprep.subr.mxu0 0.0
    %1298 = vmatpush1.msra.mxu0 0.0
    %1299 = vmatprep.subr.mxu0 0.0
    %1300 = vmatpush1.msra.mxu0 0.0
    %1301 = vmatprep.subr.mxu0 0.0
    %1302 = vmatpush1.msra.mxu0 0.0
    %1303 = vmatprep.subr.mxu0 0.0
    %1304 = vmatpush1.msra.mxu0 0.0
    %1305 = vmatprep.subr.mxu0 0.0
    %1306 = vmatpush1.msra.mxu0 0.0
    %1307 = vmatprep.subr.mxu0 0.0
    %1308 = vmatpush1.msra.mxu0 0.0
    %1309 = vmatprep.subr.mxu0 0.0
    %1310 = vmatpush1.msra.mxu0 0.0
    %1311 = vmatprep.subr.mxu0 0.0
    %1312 = vmatpush1.msra.mxu0 0.0
    %1313 = vmatprep.subr.mxu0 0.0
    %1314 = vmatpush1.msra.mxu0 0.0
    %1315 = vmatprep.subr.mxu0 0.0
    %1316 = vmatpush1.msra.mxu0 0.0
    %1317 = vmatprep.subr.mxu0 0.0
    %1318 = vmatpush1.msra.mxu0 0.0
    %1319 = vmatprep.subr.mxu0 0.0
    %1320 = vmatpush1.msra.mxu0 0.0
    %1321 = vmatprep.subr.mxu0 0.0
    %1322 = vmatpush1.msra.mxu0 0.0
    %1323 = vmatprep.subr.mxu0 0.0
    %1324 = vmatpush1.msra.mxu0 0.0
    %1325 = vmatprep.subr.mxu0 0.0
    %1326 = vmatpush1.msra.mxu0 0.0
    %1327 = vmatprep.subr.mxu0 0.0
    %1328 = vmatpush1.msra.mxu0 0.0
    %1329 = vmatprep.subr.mxu0 0.0
    %1330 = vmatpush1.msra.mxu0 0.0
    %1331 = vmatprep.subr.mxu0 0.0
    %1332 = vmatpush1.msra.mxu0 0.0
    %1333 = vmatprep.subr.mxu0 0.0
    %1334 = vmatpush1.msra.mxu0 0.0
    %1335 = vmatprep.subr.mxu0 0.0
    %1336 = vmatpush1.msra.mxu0 0.0
    %1337 = vmatprep.subr.mxu0 0.0
    %1338 = vmatpush1.msra.mxu0 0.0
    %1339 = vmatprep.subr.mxu0 0.0
    %1340 = vmatpush1.msra.mxu0 0.0
    %1341 = vmatprep.subr.mxu0 0.0
    %1342 = vmatpush1.msra.mxu0 0.0
    %1343 = vmatprep.mubr.f32.mxu0 0.0
    %1344 = vmatmul.mubr.f32.gmra.mrb[0].mxu0 %v1274
    %v1345 = vpop.f32.mrb[0].mxu0
    %v1346 = vadd.f32 0.0, %v1345
    %v1347 = vpop.f32.mrb[0].mxu0
    %1348 = vdwg.mxu0
    %v1349 = vadd.f32 %v1267, %v1346
    %s1350 = scalar_lea.vmem %s6, 48
    %v1351 = vld [vmem:[%s1350] sm:$0xff]
    %v1352 = vld [vmem:[%s1350 + $0x8] sm:$0xf]
    %v1353 = vrot.slane %v1093, 3
    %v1354 = vrot.slane %v1095, 2
    %v1355 = vsel %vm1103, %v1354, %v1353
    %v1356 = vsel %vm431, %v1355, 0
    %v1359 = vsel %vm92, %v1352, 0
    %1361 = vmatprep.subr.mxu0 0.0
    %1362 = vmatpush1.msra.mxu0 %v1351
    %1363 = vmatprep.subr.mxu0 0.0
    %1364 = vmatpush1.msra.mxu0 %v1359
    %1365 = vmatprep.subr.mxu0 0.0
    %1366 = vmatpush1.msra.mxu0 0.0
    %1367 = vmatprep.subr.mxu0 0.0
    %1368 = vmatpush1.msra.mxu0 0.0
    %1369 = vmatprep.subr.mxu0 0.0
    %1370 = vmatpush1.msra.mxu0 0.0
    %1371 = vmatprep.subr.mxu0 0.0
    %1372 = vmatpush1.msra.mxu0 0.0
    %1373 = vmatprep.subr.mxu0 0.0
    %1374 = vmatpush1.msra.mxu0 0.0
    %1375 = vmatprep.subr.mxu0 0.0
    %1376 = vmatpush1.msra.mxu0 0.0
    %1377 = vmatprep.subr.mxu0 0.0
    %1378 = vmatpush1.msra.mxu0 0.0
    %1379 = vmatprep.subr.mxu0 0.0
    %1380 = vmatpush1.msra.mxu0 0.0
    %1381 = vmatprep.subr.mxu0 0.0
    %1382 = vmatpush1.msra.mxu0 0.0
    %1383 = vmatprep.subr.mxu0 0.0
    %1384 = vmatpush1.msra.mxu0 0.0
    %1385 = vmatprep.subr.mxu0 0.0
    %1386 = vmatpush1.msra.mxu0 0.0
    %1387 = vmatprep.subr.mxu0 0.0
    %1388 = vmatpush1.msra.mxu0 0.0
    %1389 = vmatprep.subr.mxu0 0.0
    %1390 = vmatpush1.msra.mxu0 0.0
    %1391 = vmatprep.subr.mxu0 0.0
    %1392 = vmatpush1.msra.mxu0 0.0
    %1393 = vmatprep.subr.mxu0 0.0
    %1394 = vmatpush1.msra.mxu0 0.0
    %1395 = vmatprep.subr.mxu0 0.0
    %1396 = vmatpush1.msra.mxu0 0.0
    %1397 = vmatprep.subr.mxu0 0.0
    %1398 = vmatpush1.msra.mxu0 0.0
    %1399 = vmatprep.subr.mxu0 0.0
    %1400 = vmatpush1.msra.mxu0 0.0
    %1401 = vmatprep.subr.mxu0 0.0
    %1402 = vmatpush1.msra.mxu0 0.0
    %1403 = vmatprep.subr.mxu0 0.0
    %1404 = vmatpush1.msra.mxu0 0.0
    %1405 = vmatprep.subr.mxu0 0.0
    %1406 = vmatpush1.msra.mxu0 0.0
    %1407 = vmatprep.subr.mxu0 0.0
    %1408 = vmatpush1.msra.mxu0 0.0
    %1409 = vmatprep.subr.mxu0 0.0
    %1410 = vmatpush1.msra.mxu0 0.0
    %1411 = vmatprep.subr.mxu0 0.0
    %1412 = vmatpush1.msra.mxu0 0.0
    %1413 = vmatprep.subr.mxu0 0.0
    %1414 = vmatpush1.msra.mxu0 0.0
    %1415 = vmatprep.subr.mxu0 0.0
    %1416 = vmatpush1.msra.mxu0 0.0
    %1417 = vmatprep.subr.mxu0 0.0
    %1418 = vmatpush1.msra.mxu0 0.0
    %1419 = vmatprep.subr.mxu0 0.0
    %1420 = vmatpush1.msra.mxu0 0.0
    %1421 = vmatprep.subr.mxu0 0.0
    %1422 = vmatpush1.msra.mxu0 0.0
    %1423 = vmatprep.subr.mxu0 0.0
    %1424 = vmatpush1.msra.mxu0 0.0
    %1425 = vmatprep.mubr.f32.mxu0 0.0
    %1426 = vmatmul.mubr.f32.gmra.mrb[0].mxu0 %v1356
    %v1427 = vpop.f32.mrb[0].mxu0
    %v1428 = vadd.f32 0.0, %v1427
    %v1429 = vpop.f32.mrb[0].mxu0
    %1430 = vdwg.mxu0
    %v1431 = vadd.f32 %v1349, %v1428
    %s1432 = scalar_lea.vmem %s6, 64
    %v1433 = vld [vmem:[%s1432] sm:$0xff]
    %v1434 = vld [vmem:[%s1432 + $0x8] sm:$0xf]
    %v1435 = vrot.slane %v1093, 4
    %v1436 = vrot.slane %v1095, 3
    %v1437 = vsel %vm1103, %v1436, %v1435
    %v1438 = vsel %vm431, %v1437, 0
    %v1441 = vsel %vm92, %v1434, 0
    %1443 = vmatprep.subr.mxu0 0.0
    %1444 = vmatpush1.msra.mxu0 %v1433
    %1445 = vmatprep.subr.mxu0 0.0
    %1446 = vmatpush1.msra.mxu0 %v1441
    %1447 = vmatprep.subr.mxu0 0.0
    %1448 = vmatpush1.msra.mxu0 0.0
    %1449 = vmatprep.subr.mxu0 0.0
    %1450 = vmatpush1.msra.mxu0 0.0
    %1451 = vmatprep.subr.mxu0 0.0
    %1452 = vmatpush1.msra.mxu0 0.0
    %1453 = vmatprep.subr.mxu0 0.0
    %1454 = vmatpush1.msra.mxu0 0.0
    %1455 = vmatprep.subr.mxu0 0.0
    %1456 = vmatpush1.msra.mxu0 0.0
    %1457 = vmatprep.subr.mxu0 0.0
    %1458 = vmatpush1.msra.mxu0 0.0
    %1459 = vmatprep.subr.mxu0 0.0
    %1460 = vmatpush1.msra.mxu0 0.0
    %1461 = vmatprep.subr.mxu0 0.0
    %1462 = vmatpush1.msra.mxu0 0.0
    %1463 = vmatprep.subr.mxu0 0.0
    %1464 = vmatpush1.msra.mxu0 0.0
    %1465 = vmatprep.subr.mxu0 0.0
    %1466 = vmatpush1.msra.mxu0 0.0
    %1467 = vmatprep.subr.mxu0 0.0
    %1468 = vmatpush1.msra.mxu0 0.0
    %1469 = vmatprep.subr.mxu0 0.0
    %1470 = vmatpush1.msra.mxu0 0.0
    %1471 = vmatprep.subr.mxu0 0.0
    %1472 = vmatpush1.msra.mxu0 0.0
    %1473 = vmatprep.subr.mxu0 0.0
    %1474 = vmatpush1.msra.mxu0 0.0
    %1475 = vmatprep.subr.mxu0 0.0
    %1476 = vmatpush1.msra.mxu0 0.0
    %1477 = vmatprep.subr.mxu0 0.0
    %1478 = vmatpush1.msra.mxu0 0.0
    %1479 = vmatprep.subr.mxu0 0.0
    %1480 = vmatpush1.msra.mxu0 0.0
    %1481 = vmatprep.subr.mxu0 0.0
    %1482 = vmatpush1.msra.mxu0 0.0
    %1483 = vmatprep.subr.mxu0 0.0
    %1484 = vmatpush1.msra.mxu0 0.0
    %1485 = vmatprep.subr.mxu0 0.0
    %1486 = vmatpush1.msra.mxu0 0.0
    %1487 = vmatprep.subr.mxu0 0.0
    %1488 = vmatpush1.msra.mxu0 0.0
    %1489 = vmatprep.subr.mxu0 0.0
    %1490 = vmatpush1.msra.mxu0 0.0
    %1491 = vmatprep.subr.mxu0 0.0
    %1492 = vmatpush1.msra.mxu0 0.0
    %1493 = vmatprep.subr.mxu0 0.0
    %1494 = vmatpush1.msra.mxu0 0.0
    %1495 = vmatprep.subr.mxu0 0.0
    %1496 = vmatpush1.msra.mxu0 0.0
    %1497 = vmatprep.subr.mxu0 0.0
    %1498 = vmatpush1.msra.mxu0 0.0
    %1499 = vmatprep.subr.mxu0 0.0
    %1500 = vmatpush1.msra.mxu0 0.0
    %1501 = vmatprep.subr.mxu0 0.0
    %1502 = vmatpush1.msra.mxu0 0.0
    %1503 = vmatprep.subr.mxu0 0.0
    %1504 = vmatpush1.msra.mxu0 0.0
    %1505 = vmatprep.subr.mxu0 0.0
    %1506 = vmatpush1.msra.mxu0 0.0
    %1507 = vmatprep.mubr.f32.mxu0 0.0
    %1508 = vmatmul.mubr.f32.gmra.mrb[0].mxu0 %v1438
    %v1509 = vpop.f32.mrb[0].mxu0
    %v1510 = vadd.f32 0.0, %v1509
    %v1511 = vpop.f32.mrb[0].mxu0
    %1512 = vdwg.mxu0
    %v1513 = vadd.f32 %v1431, %v1510
    %s1514 = scalar_lea.vmem %s6, 80
    %v1515 = vld [vmem:[%s1514] sm:$0xff]
    %v1516 = vld [vmem:[%s1514 + $0x8] sm:$0xf]
    %v1517 = vrot.slane %v1093, 5
    %v1518 = vrot.slane %v1095, 4
    %v1519 = vsel %vm1103, %v1518, %v1517
    %v1520 = vsel %vm431, %v1519, 0
    %v1523 = vsel %vm92, %v1516, 0
    %1525 = vmatprep.subr.mxu0 0.0
    %1526 = vmatpush1.msra.mxu0 %v1515
    %1527 = vmatprep.subr.mxu0 0.0
    %1528 = vmatpush1.msra.mxu0 %v1523
    %1529 = vmatprep.subr.mxu0 0.0
    %1530 = vmatpush1.msra.mxu0 0.0
    %1531 = vmatprep.subr.mxu0 0.0
    %1532 = vmatpush1.msra.mxu0 0.0
    %1533 = vmatprep.subr.mxu0 0.0
    %1534 = vmatpush1.msra.mxu0 0.0
    %1535 = vmatprep.subr.mxu0 0.0
    %1536 = vmatpush1.msra.mxu0 0.0
    %1537 = vmatprep.subr.mxu0 0.0
    %1538 = vmatpush1.msra.mxu0 0.0
    %1539 = vmatprep.subr.mxu0 0.0
    %1540 = vmatpush1.msra.mxu0 0.0
    %1541 = vmatprep.subr.mxu0 0.0
    %1542 = vmatpush1.msra.mxu0 0.0
    %1543 = vmatprep.subr.mxu0 0.0
    %1544 = vmatpush1.msra.mxu0 0.0
    %1545 = vmatprep.subr.mxu0 0.0
    %1546 = vmatpush1.msra.mxu0 0.0
    %1547 = vmatprep.subr.mxu0 0.0
    %1548 = vmatpush1.msra.mxu0 0.0
    %1549 = vmatprep.subr.mxu0 0.0
    %1550 = vmatpush1.msra.mxu0 0.0
    %1551 = vmatprep.subr.mxu0 0.0
    %1552 = vmatpush1.msra.mxu0 0.0
    %1553 = vmatprep.subr.mxu0 0.0
    %1554 = vmatpush1.msra.mxu0 0.0
    %1555 = vmatprep.subr.mxu0 0.0
    %1556 = vmatpush1.msra.mxu0 0.0
    %1557 = vmatprep.subr.mxu0 0.0
    %1558 = vmatpush1.msra.mxu0 0.0
    %1559 = vmatprep.subr.mxu0 0.0
    %1560 = vmatpush1.msra.mxu0 0.0
    %1561 = vmatprep.subr.mxu0 0.0
    %1562 = vmatpush1.msra.mxu0 0.0
    %1563 = vmatprep.subr.mxu0 0.0
    %1564 = vmatpush1.msra.mxu0 0.0
    %1565 = vmatprep.subr.mxu0 0.0
    %1566 = vmatpush1.msra.mxu0 0.0
    %1567 = vmatprep.subr.mxu0 0.0
    %1568 = vmatpush1.msra.mxu0 0.0
    %1569 = vmatprep.subr.mxu0 0.0
    %1570 = vmatpush1.msra.mxu0 0.0
    %1571 = vmatprep.subr.mxu0 0.0
    %1572 = vmatpush1.msra.mxu0 0.0
    %1573 = vmatprep.subr.mxu0 0.0
    %1574 = vmatpush1.msra.mxu0 0.0
    %1575 = vmatprep.subr.mxu0 0.0
    %1576 = vmatpush1.msra.mxu0 0.0
    %1577 = vmatprep.subr.mxu0 0.0
    %1578 = vmatpush1.msra.mxu0 0.0
    %1579 = vmatprep.subr.mxu0 0.0
    %1580 = vmatpush1.msra.mxu0 0.0
    %1581 = vmatprep.subr.mxu0 0.0
    %1582 = vmatpush1.msra.mxu0 0.0
    %1583 = vmatprep.subr.mxu0 0.0
    %1584 = vmatpush1.msra.mxu0 0.0
    %1585 = vmatprep.subr.mxu0 0.0
    %1586 = vmatpush1.msra.mxu0 0.0
    %1587 = vmatprep.subr.mxu0 0.0
    %1588 = vmatpush1.msra.mxu0 0.0
    %1589 = vmatprep.mubr.f32.mxu0 0.0
    %1590 = vmatmul.mubr.f32.gmra.mrb[0].mxu0 %v1520
    %v1591 = vpop.f32.mrb[0].mxu0
    %v1592 = vadd.f32 0.0, %v1591
    %v1593 = vpop.f32.mrb[0].mxu0
    %1594 = vdwg.mxu0
    %v1595 = vadd.f32 %v1513, %v1592
    %s1596 = scalar_lea.vmem %s6, 96
    %v1597 = vld [vmem:[%s1596] sm:$0xff]
    %v1598 = vld [vmem:[%s1596 + $0x8] sm:$0xf]
    %v1599 = vrot.slane %v1093, 6
    %v1600 = vrot.slane %v1095, 5
    %v1601 = vsel %vm1103, %v1600, %v1599
    %v1602 = vsel %vm431, %v1601, 0
    %v1605 = vsel %vm92, %v1598, 0
    %1607 = vmatprep.subr.mxu0 0.0
    %1608 = vmatpush1.msra.mxu0 %v1597
    %1609 = vmatprep.subr.mxu0 0.0
    %1610 = vmatpush1.msra.mxu0 %v1605
    %1611 = vmatprep.subr.mxu0 0.0
    %1612 = vmatpush1.msra.mxu0 0.0
    %1613 = vmatprep.subr.mxu0 0.0
    %1614 = vmatpush1.msra.mxu0 0.0
    %1615 = vmatprep.subr.mxu0 0.0
    %1616 = vmatpush1.msra.mxu0 0.0
    %1617 = vmatprep.subr.mxu0 0.0
    %1618 = vmatpush1.msra.mxu0 0.0
    %1619 = vmatprep.subr.mxu0 0.0
    %1620 = vmatpush1.msra.mxu0 0.0
    %1621 = vmatprep.subr.mxu0 0.0
    %1622 = vmatpush1.msra.mxu0 0.0
    %1623 = vmatprep.subr.mxu0 0.0
    %1624 = vmatpush1.msra.mxu0 0.0
    %1625 = vmatprep.subr.mxu0 0.0
    %1626 = vmatpush1.msra.mxu0 0.0
    %1627 = vmatprep.subr.mxu0 0.0
    %1628 = vmatpush1.msra.mxu0 0.0
    %1629 = vmatprep.subr.mxu0 0.0
    %1630 = vmatpush1.msra.mxu0 0.0
    %1631 = vmatprep.subr.mxu0 0.0
    %1632 = vmatpush1.msra.mxu0 0.0
    %1633 = vmatprep.subr.mxu0 0.0
    %1634 = vmatpush1.msra.mxu0 0.0
    %1635 = vmatprep.subr.mxu0 0.0
    %1636 = vmatpush1.msra.mxu0 0.0
    %1637 = vmatprep.subr.mxu0 0.0
    %1638 = vmatpush1.msra.mxu0 0.0
    %1639 = vmatprep.subr.mxu0 0.0
    %1640 = vmatpush1.msra.mxu0 0.0
    %1641 = vmatprep.subr.mxu0 0.0
    %1642 = vmatpush1.msra.mxu0 0.0
    %1643 = vmatprep.subr.mxu0 0.0
    %1644 = vmatpush1.msra.mxu0 0.0
    %1645 = vmatprep.subr.mxu0 0.0
    %1646 = vmatpush1.msra.mxu0 0.0
    %1647 = vmatprep.subr.mxu0 0.0
    %1648 = vmatpush1.msra.mxu0 0.0
    %1649 = vmatprep.subr.mxu0 0.0
    %1650 = vmatpush1.msra.mxu0 0.0
    %1651 = vmatprep.subr.mxu0 0.0
    %1652 = vmatpush1.msra.mxu0 0.0
    %1653 = vmatprep.subr.mxu0 0.0
    %1654 = vmatpush1.msra.mxu0 0.0
    %1655 = vmatprep.subr.mxu0 0.0
    %1656 = vmatpush1.msra.mxu0 0.0
    %1657 = vmatprep.subr.mxu0 0.0
    %1658 = vmatpush1.msra.mxu0 0.0
    %1659 = vmatprep.subr.mxu0 0.0
    %1660 = vmatpush1.msra.mxu0 0.0
    %1661 = vmatprep.subr.mxu0 0.0
    %1662 = vmatpush1.msra.mxu0 0.0
    %1663 = vmatprep.subr.mxu0 0.0
    %1664 = vmatpush1.msra.mxu0 0.0
    %1665 = vmatprep.subr.mxu0 0.0
    %1666 = vmatpush1.msra.mxu0 0.0
    %1667 = vmatprep.subr.mxu0 0.0
    %1668 = vmatpush1.msra.mxu0 0.0
    %1669 = vmatprep.subr.mxu0 0.0
    %1670 = vmatpush1.msra.mxu0 0.0
    %1671 = vmatprep.mubr.f32.mxu0 0.0
    %1672 = vmatmul.mubr.f32.gmra.mrb[0].mxu0 %v1602
    %v1673 = vpop.f32.mrb[0].mxu0
    %v1674 = vadd.f32 0.0, %v1673
    %v1675 = vpop.f32.mrb[0].mxu0
    %1676 = vdwg.mxu0
    %v1677 = vadd.f32 %v1595, %v1674
    %s1678 = scalar_lea.vmem %s6, 112
    %v1679 = vld [vmem:[%s1678] sm:$0xff]
    %v1680 = vld [vmem:[%s1678 + $0x8] sm:$0xf]
    %v1681 = vrot.slane %v1093, 7
    %v1682 = vrot.slane %v1095, 6
    %v1683 = vsel %vm1103, %v1682, %v1681
    %v1684 = vsel %vm431, %v1683, 0
    %v1687 = vsel %vm92, %v1680, 0
    %1689 = vmatprep.subr.mxu0 0.0
    %1690 = vmatpush1.msra.mxu0 %v1679
    %1691 = vmatprep.subr.mxu0 0.0
    %1692 = vmatpush1.msra.mxu0 %v1687
    %1693 = vmatprep.subr.mxu0 0.0
    %1694 = vmatpush1.msra.mxu0 0.0
    %1695 = vmatprep.subr.mxu0 0.0
    %1696 = vmatpush1.msra.mxu0 0.0
    %1697 = vmatprep.subr.mxu0 0.0
    %1698 = vmatpush1.msra.mxu0 0.0
    %1699 = vmatprep.subr.mxu0 0.0
    %1700 = vmatpush1.msra.mxu0 0.0
    %1701 = vmatprep.subr.mxu0 0.0
    %1702 = vmatpush1.msra.mxu0 0.0
    %1703 = vmatprep.subr.mxu0 0.0
    %1704 = vmatpush1.msra.mxu0 0.0
    %1705 = vmatprep.subr.mxu0 0.0
    %1706 = vmatpush1.msra.mxu0 0.0
    %1707 = vmatprep.subr.mxu0 0.0
    %1708 = vmatpush1.msra.mxu0 0.0
    %1709 = vmatprep.subr.mxu0 0.0
    %1710 = vmatpush1.msra.mxu0 0.0
    %1711 = vmatprep.subr.mxu0 0.0
    %1712 = vmatpush1.msra.mxu0 0.0
    %1713 = vmatprep.subr.mxu0 0.0
    %1714 = vmatpush1.msra.mxu0 0.0
    %1715 = vmatprep.subr.mxu0 0.0
    %1716 = vmatpush1.msra.mxu0 0.0
    %1717 = vmatprep.subr.mxu0 0.0
    %1718 = vmatpush1.msra.mxu0 0.0
    %1719 = vmatprep.subr.mxu0 0.0
    %1720 = vmatpush1.msra.mxu0 0.0
    %1721 = vmatprep.subr.mxu0 0.0
    %1722 = vmatpush1.msra.mxu0 0.0
    %1723 = vmatprep.subr.mxu0 0.0
    %1724 = vmatpush1.msra.mxu0 0.0
    %1725 = vmatprep.subr.mxu0 0.0
    %1726 = vmatpush1.msra.mxu0 0.0
    %1727 = vmatprep.subr.mxu0 0.0
    %1728 = vmatpush1.msra.mxu0 0.0
    %1729 = vmatprep.subr.mxu0 0.0
    %1730 = vmatpush1.msra.mxu0 0.0
    %1731 = vmatprep.subr.mxu0 0.0
    %1732 = vmatpush1.msra.mxu0 0.0
    %1733 = vmatprep.subr.mxu0 0.0
    %1734 = vmatpush1.msra.mxu0 0.0
    %1735 = vmatprep.subr.mxu0 0.0
    %1736 = vmatpush1.msra.mxu0 0.0
    %1737 = vmatprep.subr.mxu0 0.0
    %1738 = vmatpush1.msra.mxu0 0.0
    %1739 = vmatprep.subr.mxu0 0.0
    %1740 = vmatpush1.msra.mxu0 0.0
    %1741 = vmatprep.subr.mxu0 0.0
    %1742 = vmatpush1.msra.mxu0 0.0
    %1743 = vmatprep.subr.mxu0 0.0
    %1744 = vmatpush1.msra.mxu0 0.0
    %1745 = vmatprep.subr.mxu0 0.0
    %1746 = vmatpush1.msra.mxu0 0.0
    %1747 = vmatprep.subr.mxu0 0.0
    %1748 = vmatpush1.msra.mxu0 0.0
    %1749 = vmatprep.subr.mxu0 0.0
    %1750 = vmatpush1.msra.mxu0 0.0
    %1751 = vmatprep.subr.mxu0 0.0
    %1752 = vmatpush1.msra.mxu0 0.0
    %1753 = vmatprep.mubr.f32.mxu0 0.0
    %1754 = vmatmul.mubr.f32.gmra.mrb[0].mxu0 %v1684
    %v1755 = vpop.f32.mrb[0].mxu0
    %v1756 = vadd.f32 0.0, %v1755
    %v1757 = vpop.f32.mrb[0].mxu0
    %1758 = vdwg.mxu0
    %v1759 = vadd.f32 %v1677, %v1756
    %s1760 = scalar_lea.vmem %s6, 128
    %v1761 = vld [vmem:[%s1760] sm:$0xff]
    %v1762 = vld [vmem:[%s1760 + $0x8] sm:$0xf]
    %v1765 = vrot.slane %v1096, 7
    %v1766 = vsel %vm1103, %v1765, %v1094
    %v1767 = vsel %vm431, %v1766, 0
    %v1770 = vsel %vm92, %v1762, 0
    %1772 = vmatprep.subr.mxu0 0.0
    %1773 = vmatpush1.msra.mxu0 %v1761
    %1774 = vmatprep.subr.mxu0 0.0
    %1775 = vmatpush1.msra.mxu0 %v1770
    %1776 = vmatprep.subr.mxu0 0.0
    %1777 = vmatpush1.msra.mxu0 0.0
    %1778 = vmatprep.subr.mxu0 0.0
    %1779 = vmatpush1.msra.mxu0 0.0
    %1780 = vmatprep.subr.mxu0 0.0
    %1781 = vmatpush1.msra.mxu0 0.0
    %1782 = vmatprep.subr.mxu0 0.0
    %1783 = vmatpush1.msra.mxu0 0.0
    %1784 = vmatprep.subr.mxu0 0.0
    %1785 = vmatpush1.msra.mxu0 0.0
    %1786 = vmatprep.subr.mxu0 0.0
    %1787 = vmatpush1.msra.mxu0 0.0
    %1788 = vmatprep.subr.mxu0 0.0
    %1789 = vmatpush1.msra.mxu0 0.0
    %1790 = vmatprep.subr.mxu0 0.0
    %1791 = vmatpush1.msra.mxu0 0.0
    %1792 = vmatprep.subr.mxu0 0.0
    %1793 = vmatpush1.msra.mxu0 0.0
    %1794 = vmatprep.subr.mxu0 0.0
    %1795 = vmatpush1.msra.mxu0 0.0
    %1796 = vmatprep.subr.mxu0 0.0
    %1797 = vmatpush1.msra.mxu0 0.0
    %1798 = vmatprep.subr.mxu0 0.0
    %1799 = vmatpush1.msra.mxu0 0.0
    %1800 = vmatprep.subr.mxu0 0.0
    %1801 = vmatpush1.msra.mxu0 0.0
    %1802 = vmatprep.subr.mxu0 0.0
    %1803 = vmatpush1.msra.mxu0 0.0
    %1804 = vmatprep.subr.mxu0 0.0
    %1805 = vmatpush1.msra.mxu0 0.0
    %1806 = vmatprep.subr.mxu0 0.0
    %1807 = vmatpush1.msra.mxu0 0.0
    %1808 = vmatprep.subr.mxu0 0.0
    %1809 = vmatpush1.msra.mxu0 0.0
    %1810 = vmatprep.subr.mxu0 0.0
    %1811 = vmatpush1.msra.mxu0 0.0
    %1812 = vmatprep.subr.mxu0 0.0
    %1813 = vmatpush1.msra.mxu0 0.0
    %1814 = vmatprep.subr.mxu0 0.0
    %1815 = vmatpush1.msra.mxu0 0.0
    %1816 = vmatprep.subr.mxu0 0.0
    %1817 = vmatpush1.msra.mxu0 0.0
    %1818 = vmatprep.subr.mxu0 0.0
    %1819 = vmatpush1.msra.mxu0 0.0
    %1820 = vmatprep.subr.mxu0 0.0
    %1821 = vmatpush1.msra.mxu0 0.0
    %1822 = vmatprep.subr.mxu0 0.0
    %1823 = vmatpush1.msra.mxu0 0.0
    %1824 = vmatprep.subr.mxu0 0.0
    %1825 = vmatpush1.msra.mxu0 0.0
    %1826 = vmatprep.subr.mxu0 0.0
    %1827 = vmatpush1.msra.mxu0 0.0
    %1828 = vmatprep.subr.mxu0 0.0
    %1829 = vmatpush1.msra.mxu0 0.0
    %1830 = vmatprep.subr.mxu0 0.0
    %1831 = vmatpush1.msra.mxu0 0.0
    %1832 = vmatprep.subr.mxu0 0.0
    %1833 = vmatpush1.msra.mxu0 0.0
    %1834 = vmatprep.subr.mxu0 0.0
    %1835 = vmatpush1.msra.mxu0 0.0
    %1836 = vmatprep.mubr.f32.mxu0 0.0
    %1837 = vmatmul.mubr.f32.gmra.mrb[0].mxu0 %v1767
    %v1838 = vpop.f32.mrb[0].mxu0
    %v1839 = vadd.f32 0.0, %v1838
    %v1840 = vpop.f32.mrb[0].mxu0
    %1841 = vdwg.mxu0
    %v1842 = vadd.f32 %v1759, %v1839
    %s1843 = scalar_lea.vmem %s6, 144
    %v1844 = vld [vmem:[%s1843] sm:$0xff]
    %v1845 = vld [vmem:[%s1843 + $0x8] sm:$0xf]
    %v1846 = vrot.slane %v1094, 1
    %v1847 = vsel %vm1103, %v1096, %v1846
    %v1848 = vsel %vm431, %v1847, 0
    %v1851 = vsel %vm92, %v1845, 0
    %1853 = vmatprep.subr.mxu0 0.0
    %1854 = vmatpush1.msra.mxu0 %v1844
    %1855 = vmatprep.subr.mxu0 0.0
    %1856 = vmatpush1.msra.mxu0 %v1851
    %1857 = vmatprep.subr.mxu0 0.0
    %1858 = vmatpush1.msra.mxu0 0.0
    %1859 = vmatprep.subr.mxu0 0.0
    %1860 = vmatpush1.msra.mxu0 0.0
    %1861 = vmatprep.subr.mxu0 0.0
    %1862 = vmatpush1.msra.mxu0 0.0
    %1863 = vmatprep.subr.mxu0 0.0
    %1864 = vmatpush1.msra.mxu0 0.0
    %1865 = vmatprep.subr.mxu0 0.0
    %1866 = vmatpush1.msra.mxu0 0.0
    %1867 = vmatprep.subr.mxu0 0.0
    %1868 = vmatpush1.msra.mxu0 0.0
    %1869 = vmatprep.subr.mxu0 0.0
    %1870 = vmatpush1.msra.mxu0 0.0
    %1871 = vmatprep.subr.mxu0 0.0
    %1872 = vmatpush1.msra.mxu0 0.0
    %1873 = vmatprep.subr.mxu0 0.0
    %1874 = vmatpush1.msra.mxu0 0.0
    %1875 = vmatprep.subr.mxu0 0.0
    %1876 = vmatpush1.msra.mxu0 0.0
    %1877 = vmatprep.subr.mxu0 0.0
    %1878 = vmatpush1.msra.mxu0 0.0
    %1879 = vmatprep.subr.mxu0 0.0
    %1880 = vmatpush1.msra.mxu0 0.0
    %1881 = vmatprep.subr.mxu0 0.0
    %1882 = vmatpush1.msra.mxu0 0.0
    %1883 = vmatprep.subr.mxu0 0.0
    %1884 = vmatpush1.msra.mxu0 0.0
    %1885 = vmatprep.subr.mxu0 0.0
    %1886 = vmatpush1.msra.mxu0 0.0
    %1887 = vmatprep.subr.mxu0 0.0
    %1888 = vmatpush1.msra.mxu0 0.0
    %1889 = vmatprep.subr.mxu0 0.0
    %1890 = vmatpush1.msra.mxu0 0.0
    %1891 = vmatprep.subr.mxu0 0.0
    %1892 = vmatpush1.msra.mxu0 0.0
    %1893 = vmatprep.subr.mxu0 0.0
    %1894 = vmatpush1.msra.mxu0 0.0
    %1895 = vmatprep.subr.mxu0 0.0
    %1896 = vmatpush1.msra.mxu0 0.0
    %1897 = vmatprep.subr.mxu0 0.0
    %1898 = vmatpush1.msra.mxu0 0.0
    %1899 = vmatprep.subr.mxu0 0.0
    %1900 = vmatpush1.msra.mxu0 0.0
    %1901 = vmatprep.subr.mxu0 0.0
    %1902 = vmatpush1.msra.mxu0 0.0
    %1903 = vmatprep.subr.mxu0 0.0
    %1904 = vmatpush1.msra.mxu0 0.0
    %1905 = vmatprep.subr.mxu0 0.0
    %1906 = vmatpush1.msra.mxu0 0.0
    %1907 = vmatprep.subr.mxu0 0.0
    %1908 = vmatpush1.msra.mxu0 0.0
    %1909 = vmatprep.subr.mxu0 0.0
    %1910 = vmatpush1.msra.mxu0 0.0
    %1911 = vmatprep.subr.mxu0 0.0
    %1912 = vmatpush1.msra.mxu0 0.0
    %1913 = vmatprep.subr.mxu0 0.0
    %1914 = vmatpush1.msra.mxu0 0.0
    %1915 = vmatprep.subr.mxu0 0.0
    %1916 = vmatpush1.msra.mxu0 0.0
    %1917 = vmatprep.mubr.f32.mxu0 0.0
    %1918 = vmatmul.mubr.f32.gmra.mrb[0].mxu0 %v1848
    %v1919 = vpop.f32.mrb[0].mxu0
    %v1920 = vadd.f32 0.0, %v1919
    %v1921 = vpop.f32.mrb[0].mxu0
    %1922 = vdwg.mxu0
    %v1923 = vadd.f32 %v1842, %v1920
    %s1924 = scalar_lea.vmem %s6, 160
    %v1925 = vld [vmem:[%s1924] sm:$0xff]
    %v1926 = vld [vmem:[%s1924 + $0x8] sm:$0xf]
    %v1927 = vrot.slane %v1094, 2
    %v1928 = vrot.slane %v1096, 1
    %v1929 = vsel %vm1103, %v1928, %v1927
    %v1930 = vsel %vm431, %v1929, 0
    %v1933 = vsel %vm92, %v1926, 0
    %1935 = vmatprep.subr.mxu0 0.0
    %1936 = vmatpush1.msra.mxu0 %v1925
    %1937 = vmatprep.subr.mxu0 0.0
    %1938 = vmatpush1.msra.mxu0 %v1933
    %1939 = vmatprep.subr.mxu0 0.0
    %1940 = vmatpush1.msra.mxu0 0.0
    %1941 = vmatprep.subr.mxu0 0.0
    %1942 = vmatpush1.msra.mxu0 0.0
    %1943 = vmatprep.subr.mxu0 0.0
    %1944 = vmatpush1.msra.mxu0 0.0
    %1945 = vmatprep.subr.mxu0 0.0
    %1946 = vmatpush1.msra.mxu0 0.0
    %1947 = vmatprep.subr.mxu0 0.0
    %1948 = vmatpush1.msra.mxu0 0.0
    %1949 = vmatprep.subr.mxu0 0.0
    %1950 = vmatpush1.msra.mxu0 0.0
    %1951 = vmatprep.subr.mxu0 0.0
    %1952 = vmatpush1.msra.mxu0 0.0
    %1953 = vmatprep.subr.mxu0 0.0
    %1954 = vmatpush1.msra.mxu0 0.0
    %1955 = vmatprep.subr.mxu0 0.0
    %1956 = vmatpush1.msra.mxu0 0.0
    %1957 = vmatprep.subr.mxu0 0.0
    %1958 = vmatpush1.msra.mxu0 0.0
    %1959 = vmatprep.subr.mxu0 0.0
    %1960 = vmatpush1.msra.mxu0 0.0
    %1961 = vmatprep.subr.mxu0 0.0
    %1962 = vmatpush1.msra.mxu0 0.0
    %1963 = vmatprep.subr.mxu0 0.0
    %1964 = vmatpush1.msra.mxu0 0.0
    %1965 = vmatprep.subr.mxu0 0.0
    %1966 = vmatpush1.msra.mxu0 0.0
    %1967 = vmatprep.subr.mxu0 0.0
    %1968 = vmatpush1.msra.mxu0 0.0
    %1969 = vmatprep.subr.mxu0 0.0
    %1970 = vmatpush1.msra.mxu0 0.0
    %1971 = vmatprep.subr.mxu0 0.0
    %1972 = vmatpush1.msra.mxu0 0.0
    %1973 = vmatprep.subr.mxu0 0.0
    %1974 = vmatpush1.msra.mxu0 0.0
    %1975 = vmatprep.subr.mxu0 0.0
    %1976 = vmatpush1.msra.mxu0 0.0
    %1977 = vmatprep.subr.mxu0 0.0
    %1978 = vmatpush1.msra.mxu0 0.0
    %1979 = vmatprep.subr.mxu0 0.0
    %1980 = vmatpush1.msra.mxu0 0.0
    %1981 = vmatprep.subr.mxu0 0.0
    %1982 = vmatpush1.msra.mxu0 0.0
    %1983 = vmatprep.subr.mxu0 0.0
    %1984 = vmatpush1.msra.mxu0 0.0
    %1985 = vmatprep.subr.mxu0 0.0
    %1986 = vmatpush1.msra.mxu0 0.0
    %1987 = vmatprep.subr.mxu0 0.0
    %1988 = vmatpush1.msra.mxu0 0.0
    %1989 = vmatprep.subr.mxu0 0.0
    %1990 = vmatpush1.msra.mxu0 0.0
    %1991 = vmatprep.subr.mxu0 0.0
    %1992 = vmatpush1.msra.mxu0 0.0
    %1993 = vmatprep.subr.mxu0 0.0
    %1994 = vmatpush1.msra.mxu0 0.0
    %1995 = vmatprep.subr.mxu0 0.0
    %1996 = vmatpush1.msra.mxu0 0.0
    %1997 = vmatprep.subr.mxu0 0.0
    %1998 = vmatpush1.msra.mxu0 0.0
    %1999 = vmatprep.mubr.f32.mxu0 0.0
    %2000 = vmatmul.mubr.f32.gmra.mrb[0].mxu0 %v1930
    %v2001 = vpop.f32.mrb[0].mxu0
    %v2002 = vadd.f32 0.0, %v2001
    %v2003 = vpop.f32.mrb[0].mxu0
    %2004 = vdwg.mxu0
    %v2005 = vadd.f32 %v1923, %v2002
    %s2006 = scalar_lea.vmem %s6, 176
    %v2007 = vld [vmem:[%s2006] sm:$0xff]
    %v2008 = vld [vmem:[%s2006 + $0x8] sm:$0xf]
    %v2009 = vrot.slane %v1094, 3
    %v2010 = vrot.slane %v1096, 2
    %v2011 = vsel %vm1103, %v2010, %v2009
    %v2012 = vsel %vm431, %v2011, 0
    %v2015 = vsel %vm92, %v2008, 0
    %2017 = vmatprep.subr.mxu0 0.0
    %2018 = vmatpush1.msra.mxu0 %v2007
    %2019 = vmatprep.subr.mxu0 0.0
    %2020 = vmatpush1.msra.mxu0 %v2015
    %2021 = vmatprep.subr.mxu0 0.0
    %2022 = vmatpush1.msra.mxu0 0.0
    %2023 = vmatprep.subr.mxu0 0.0
    %2024 = vmatpush1.msra.mxu0 0.0
    %2025 = vmatprep.subr.mxu0 0.0
    %2026 = vmatpush1.msra.mxu0 0.0
    %2027 = vmatprep.subr.mxu0 0.0
    %2028 = vmatpush1.msra.mxu0 0.0
    %2029 = vmatprep.subr.mxu0 0.0
    %2030 = vmatpush1.msra.mxu0 0.0
    %2031 = vmatprep.subr.mxu0 0.0
    %2032 = vmatpush1.msra.mxu0 0.0
    %2033 = vmatprep.subr.mxu0 0.0
    %2034 = vmatpush1.msra.mxu0 0.0
    %2035 = vmatprep.subr.mxu0 0.0
    %2036 = vmatpush1.msra.mxu0 0.0
    %2037 = vmatprep.subr.mxu0 0.0
    %2038 = vmatpush1.msra.mxu0 0.0
    %2039 = vmatprep.subr.mxu0 0.0
    %2040 = vmatpush1.msra.mxu0 0.0
    %2041 = vmatprep.subr.mxu0 0.0
    %2042 = vmatpush1.msra.mxu0 0.0
    %2043 = vmatprep.subr.mxu0 0.0
    %2044 = vmatpush1.msra.mxu0 0.0
    %2045 = vmatprep.subr.mxu0 0.0
    %2046 = vmatpush1.msra.mxu0 0.0
    %2047 = vmatprep.subr.mxu0 0.0
    %2048 = vmatpush1.msra.mxu0 0.0
    %2049 = vmatprep.subr.mxu0 0.0
    %2050 = vmatpush1.msra.mxu0 0.0
    %2051 = vmatprep.subr.mxu0 0.0
    %2052 = vmatpush1.msra.mxu0 0.0
    %2053 = vmatprep.subr.mxu0 0.0
    %2054 = vmatpush1.msra.mxu0 0.0
    %2055 = vmatprep.subr.mxu0 0.0
    %2056 = vmatpush1.msra.mxu0 0.0
    %2057 = vmatprep.subr.mxu0 0.0
    %2058 = vmatpush1.msra.mxu0 0.0
    %2059 = vmatprep.subr.mxu0 0.0
    %2060 = vmatpush1.msra.mxu0 0.0
    %2061 = vmatprep.subr.mxu0 0.0
    %2062 = vmatpush1.msra.mxu0 0.0
    %2063 = vmatprep.subr.mxu0 0.0
    %2064 = vmatpush1.msra.mxu0 0.0
    %2065 = vmatprep.subr.mxu0 0.0
    %2066 = vmatpush1.msra.mxu0 0.0
    %2067 = vmatprep.subr.mxu0 0.0
    %2068 = vmatpush1.msra.mxu0 0.0
    %2069 = vmatprep.subr.mxu0 0.0
    %2070 = vmatpush1.msra.mxu0 0.0
    %2071 = vmatprep.subr.mxu0 0.0
    %2072 = vmatpush1.msra.mxu0 0.0
    %2073 = vmatprep.subr.mxu0 0.0
    %2074 = vmatpush1.msra.mxu0 0.0
    %2075 = vmatprep.subr.mxu0 0.0
    %2076 = vmatpush1.msra.mxu0 0.0
    %2077 = vmatprep.subr.mxu0 0.0
    %2078 = vmatpush1.msra.mxu0 0.0
    %2079 = vmatprep.subr.mxu0 0.0
    %2080 = vmatpush1.msra.mxu0 0.0
    %2081 = vmatprep.mubr.f32.mxu0 0.0
    %2082 = vmatmul.mubr.f32.gmra.mrb[0].mxu0 %v2012
    %v2083 = vpop.f32.mrb[0].mxu0
    %v2084 = vadd.f32 0.0, %v2083
    %v2085 = vpop.f32.mrb[0].mxu0
    %2086 = vdwg.mxu0
    %v2087 = vadd.f32 %v2005, %v2084
    %s2088 = scalar_lea.vmem %s6, 192
    %v2089 = vld [vmem:[%s2088] sm:$0xff]
    %v2090 = vld [vmem:[%s2088 + $0x8] sm:$0xf]
    %v2091 = vrot.slane %v1094, 4
    %v2092 = vrot.slane %v1096, 3
    %v2093 = vsel %vm1103, %v2092, %v2091
    %v2094 = vsel %vm431, %v2093, 0
    %v2097 = vsel %vm92, %v2090, 0
    %2099 = vmatprep.subr.mxu0 0.0
    %2100 = vmatpush1.msra.mxu0 %v2089
    %2101 = vmatprep.subr.mxu0 0.0
    %2102 = vmatpush1.msra.mxu0 %v2097
    %2103 = vmatprep.subr.mxu0 0.0
    %2104 = vmatpush1.msra.mxu0 0.0
    %2105 = vmatprep.subr.mxu0 0.0
    %2106 = vmatpush1.msra.mxu0 0.0
    %2107 = vmatprep.subr.mxu0 0.0
    %2108 = vmatpush1.msra.mxu0 0.0
    %2109 = vmatprep.subr.mxu0 0.0
    %2110 = vmatpush1.msra.mxu0 0.0
    %2111 = vmatprep.subr.mxu0 0.0
    %2112 = vmatpush1.msra.mxu0 0.0
    %2113 = vmatprep.subr.mxu0 0.0
    %2114 = vmatpush1.msra.mxu0 0.0
    %2115 = vmatprep.subr.mxu0 0.0
    %2116 = vmatpush1.msra.mxu0 0.0
    %2117 = vmatprep.subr.mxu0 0.0
    %2118 = vmatpush1.msra.mxu0 0.0
    %2119 = vmatprep.subr.mxu0 0.0
    %2120 = vmatpush1.msra.mxu0 0.0
    %2121 = vmatprep.subr.mxu0 0.0
    %2122 = vmatpush1.msra.mxu0 0.0
    %2123 = vmatprep.subr.mxu0 0.0
    %2124 = vmatpush1.msra.mxu0 0.0
    %2125 = vmatprep.subr.mxu0 0.0
    %2126 = vmatpush1.msra.mxu0 0.0
    %2127 = vmatprep.subr.mxu0 0.0
    %2128 = vmatpush1.msra.mxu0 0.0
    %2129 = vmatprep.subr.mxu0 0.0
    %2130 = vmatpush1.msra.mxu0 0.0
    %2131 = vmatprep.subr.mxu0 0.0
    %2132 = vmatpush1.msra.mxu0 0.0
    %2133 = vmatprep.subr.mxu0 0.0
    %2134 = vmatpush1.msra.mxu0 0.0
    %2135 = vmatprep.subr.mxu0 0.0
    %2136 = vmatpush1.msra.mxu0 0.0
    %2137 = vmatprep.subr.mxu0 0.0
    %2138 = vmatpush1.msra.mxu0 0.0
    %2139 = vmatprep.subr.mxu0 0.0
    %2140 = vmatpush1.msra.mxu0 0.0
    %2141 = vmatprep.subr.mxu0 0.0
    %2142 = vmatpush1.msra.mxu0 0.0
    %2143 = vmatprep.subr.mxu0 0.0
    %2144 = vmatpush1.msra.mxu0 0.0
    %2145 = vmatprep.subr.mxu0 0.0
    %2146 = vmatpush1.msra.mxu0 0.0
    %2147 = vmatprep.subr.mxu0 0.0
    %2148 = vmatpush1.msra.mxu0 0.0
    %2149 = vmatprep.subr.mxu0 0.0
    %2150 = vmatpush1.msra.mxu0 0.0
    %2151 = vmatprep.subr.mxu0 0.0
    %2152 = vmatpush1.msra.mxu0 0.0
    %2153 = vmatprep.subr.mxu0 0.0
    %2154 = vmatpush1.msra.mxu0 0.0
    %2155 = vmatprep.subr.mxu0 0.0
    %2156 = vmatpush1.msra.mxu0 0.0
    %2157 = vmatprep.subr.mxu0 0.0
    %2158 = vmatpush1.msra.mxu0 0.0
    %2159 = vmatprep.subr.mxu0 0.0
    %2160 = vmatpush1.msra.mxu0 0.0
    %2161 = vmatprep.subr.mxu0 0.0
    %2162 = vmatpush1.msra.mxu0 0.0
    %2163 = vmatprep.mubr.f32.mxu0 0.0
    %2164 = vmatmul.mubr.f32.gmra.mrb[0].mxu0 %v2094
    %v2165 = vpop.f32.mrb[0].mxu0
    %v2166 = vadd.f32 0.0, %v2165
    %v2167 = vpop.f32.mrb[0].mxu0
    %2168 = vdwg.mxu0
    %v2169 = vadd.f32 %v2087, %v2166
    %s2170 = scalar_lea.vmem %s6, 208
    %v2171 = vld [vmem:[%s2170] sm:$0xff]
    %v2172 = vld [vmem:[%s2170 + $0x8] sm:$0xf]
    %v2173 = vrot.slane %v1094, 5
    %v2174 = vrot.slane %v1096, 4
    %v2175 = vsel %vm1103, %v2174, %v2173
    %v2176 = vsel %vm431, %v2175, 0
    %v2179 = vsel %vm92, %v2172, 0
    %2181 = vmatprep.subr.mxu0 0.0
    %2182 = vmatpush1.msra.mxu0 %v2171
    %2183 = vmatprep.subr.mxu0 0.0
    %2184 = vmatpush1.msra.mxu0 %v2179
    %2185 = vmatprep.subr.mxu0 0.0
    %2186 = vmatpush1.msra.mxu0 0.0
    %2187 = vmatprep.subr.mxu0 0.0
    %2188 = vmatpush1.msra.mxu0 0.0
    %2189 = vmatprep.subr.mxu0 0.0
    %2190 = vmatpush1.msra.mxu0 0.0
    %2191 = vmatprep.subr.mxu0 0.0
    %2192 = vmatpush1.msra.mxu0 0.0
    %2193 = vmatprep.subr.mxu0 0.0
    %2194 = vmatpush1.msra.mxu0 0.0
    %2195 = vmatprep.subr.mxu0 0.0
    %2196 = vmatpush1.msra.mxu0 0.0
    %2197 = vmatprep.subr.mxu0 0.0
    %2198 = vmatpush1.msra.mxu0 0.0
    %2199 = vmatprep.subr.mxu0 0.0
    %2200 = vmatpush1.msra.mxu0 0.0
    %2201 = vmatprep.subr.mxu0 0.0
    %2202 = vmatpush1.msra.mxu0 0.0
    %2203 = vmatprep.subr.mxu0 0.0
    %2204 = vmatpush1.msra.mxu0 0.0
    %2205 = vmatprep.subr.mxu0 0.0
    %2206 = vmatpush1.msra.mxu0 0.0
    %2207 = vmatprep.subr.mxu0 0.0
    %2208 = vmatpush1.msra.mxu0 0.0
    %2209 = vmatprep.subr.mxu0 0.0
    %2210 = vmatpush1.msra.mxu0 0.0
    %2211 = vmatprep.subr.mxu0 0.0
    %2212 = vmatpush1.msra.mxu0 0.0
    %2213 = vmatprep.subr.mxu0 0.0
    %2214 = vmatpush1.msra.mxu0 0.0
    %2215 = vmatprep.subr.mxu0 0.0
    %2216 = vmatpush1.msra.mxu0 0.0
    %2217 = vmatprep.subr.mxu0 0.0
    %2218 = vmatpush1.msra.mxu0 0.0
    %2219 = vmatprep.subr.mxu0 0.0
    %2220 = vmatpush1.msra.mxu0 0.0
    %2221 = vmatprep.subr.mxu0 0.0
    %2222 = vmatpush1.msra.mxu0 0.0
    %2223 = vmatprep.subr.mxu0 0.0
    %2224 = vmatpush1.msra.mxu0 0.0
    %2225 = vmatprep.subr.mxu0 0.0
    %2226 = vmatpush1.msra.mxu0 0.0
    %2227 = vmatprep.subr.mxu0 0.0
    %2228 = vmatpush1.msra.mxu0 0.0
    %2229 = vmatprep.subr.mxu0 0.0
    %2230 = vmatpush1.msra.mxu0 0.0
    %2231 = vmatprep.subr.mxu0 0.0
    %2232 = vmatpush1.msra.mxu0 0.0
    %2233 = vmatprep.subr.mxu0 0.0
    %2234 = vmatpush1.msra.mxu0 0.0
    %2235 = vmatprep.subr.mxu0 0.0
    %2236 = vmatpush1.msra.mxu0 0.0
    %2237 = vmatprep.subr.mxu0 0.0
    %2238 = vmatpush1.msra.mxu0 0.0
    %2239 = vmatprep.subr.mxu0 0.0
    %2240 = vmatpush1.msra.mxu0 0.0
    %2241 = vmatprep.subr.mxu0 0.0
    %2242 = vmatpush1.msra.mxu0 0.0
    %2243 = vmatprep.subr.mxu0 0.0
    %2244 = vmatpush1.msra.mxu0 0.0
    %2245 = vmatprep.mubr.f32.mxu0 0.0
    %2246 = vmatmul.mubr.f32.gmra.mrb[0].mxu0 %v2176
    %v2247 = vpop.f32.mrb[0].mxu0
    %v2248 = vadd.f32 0.0, %v2247
    %v2249 = vpop.f32.mrb[0].mxu0
    %2250 = vdwg.mxu0
    %v2251 = vadd.f32 %v2169, %v2248
    %s2252 = scalar_lea.vmem %s6, 224
    %v2253 = vld [vmem:[%s2252] sm:$0xff]
    %v2254 = vld [vmem:[%s2252 + $0x8] sm:$0xf]
    %v2255 = vrot.slane %v1094, 6
    %v2256 = vrot.slane %v1096, 5
    %v2257 = vsel %vm1103, %v2256, %v2255
    %v2258 = vsel %vm431, %v2257, 0
    %v2261 = vsel %vm92, %v2254, 0
    %2263 = vmatprep.subr.mxu0 0.0
    %2264 = vmatpush1.msra.mxu0 %v2253
    %2265 = vmatprep.subr.mxu0 0.0
    %2266 = vmatpush1.msra.mxu0 %v2261
    %2267 = vmatprep.subr.mxu0 0.0
    %2268 = vmatpush1.msra.mxu0 0.0
    %2269 = vmatprep.subr.mxu0 0.0
    %2270 = vmatpush1.msra.mxu0 0.0
    %2271 = vmatprep.subr.mxu0 0.0
    %2272 = vmatpush1.msra.mxu0 0.0
    %2273 = vmatprep.subr.mxu0 0.0
    %2274 = vmatpush1.msra.mxu0 0.0
    %2275 = vmatprep.subr.mxu0 0.0
    %2276 = vmatpush1.msra.mxu0 0.0
    %2277 = vmatprep.subr.mxu0 0.0
    %2278 = vmatpush1.msra.mxu0 0.0
    %2279 = vmatprep.subr.mxu0 0.0
    %2280 = vmatpush1.msra.mxu0 0.0
    %2281 = vmatprep.subr.mxu0 0.0
    %2282 = vmatpush1.msra.mxu0 0.0
    %2283 = vmatprep.subr.mxu0 0.0
    %2284 = vmatpush1.msra.mxu0 0.0
    %2285 = vmatprep.subr.mxu0 0.0
    %2286 = vmatpush1.msra.mxu0 0.0
    %2287 = vmatprep.subr.mxu0 0.0
    %2288 = vmatpush1.msra.mxu0 0.0
    %2289 = vmatprep.subr.mxu0 0.0
    %2290 = vmatpush1.msra.mxu0 0.0
    %2291 = vmatprep.subr.mxu0 0.0
    %2292 = vmatpush1.msra.mxu0 0.0
    %2293 = vmatprep.subr.mxu0 0.0
    %2294 = vmatpush1.msra.mxu0 0.0
    %2295 = vmatprep.subr.mxu0 0.0
    %2296 = vmatpush1.msra.mxu0 0.0
    %2297 = vmatprep.subr.mxu0 0.0
    %2298 = vmatpush1.msra.mxu0 0.0
    %2299 = vmatprep.subr.mxu0 0.0
    %2300 = vmatpush1.msra.mxu0 0.0
    %2301 = vmatprep.subr.mxu0 0.0
    %2302 = vmatpush1.msra.mxu0 0.0
    %2303 = vmatprep.subr.mxu0 0.0
    %2304 = vmatpush1.msra.mxu0 0.0
    %2305 = vmatprep.subr.mxu0 0.0
    %2306 = vmatpush1.msra.mxu0 0.0
    %2307 = vmatprep.subr.mxu0 0.0
    %2308 = vmatpush1.msra.mxu0 0.0
    %2309 = vmatprep.subr.mxu0 0.0
    %2310 = vmatpush1.msra.mxu0 0.0
    %2311 = vmatprep.subr.mxu0 0.0
    %2312 = vmatpush1.msra.mxu0 0.0
    %2313 = vmatprep.subr.mxu0 0.0
    %2314 = vmatpush1.msra.mxu0 0.0
    %2315 = vmatprep.subr.mxu0 0.0
    %2316 = vmatpush1.msra.mxu0 0.0
    %2317 = vmatprep.subr.mxu0 0.0
    %2318 = vmatpush1.msra.mxu0 0.0
    %2319 = vmatprep.subr.mxu0 0.0
    %2320 = vmatpush1.msra.mxu0 0.0
    %2321 = vmatprep.subr.mxu0 0.0
    %2322 = vmatpush1.msra.mxu0 0.0
    %2323 = vmatprep.subr.mxu0 0.0
    %2324 = vmatpush1.msra.mxu0 0.0
    %2325 = vmatprep.subr.mxu0 0.0
    %2326 = vmatpush1.msra.mxu0 0.0
    %2327 = vmatprep.mubr.f32.mxu0 0.0
    %2328 = vmatmul.mubr.f32.gmra.mrb[0].mxu0 %v2258
    %v2329 = vpop.f32.mrb[0].mxu0
    %v2330 = vadd.f32 0.0, %v2329
    %v2331 = vpop.f32.mrb[0].mxu0
    %2332 = vdwg.mxu0
    %v2333 = vadd.f32 %v2251, %v2330
    %s2334 = scalar_lea.vmem %s6, 240
    %v2335 = vld [vmem:[%s2334] sm:$0xff]
    %v2336 = vld [vmem:[%s2334 + $0x8] sm:$0xf]
    %v2337 = vrot.slane %v1094, 7
    %v2338 = vrot.slane %v1096, 6
    %v2339 = vsel %vm1103, %v2338, %v2337
    %v2340 = vsel %vm431, %v2339, 0
    %v2343 = vsel %vm92, %v2336, 0
    %2345 = vmatprep.subr.mxu0 0.0
    %2346 = vmatpush1.msra.mxu0 %v2335
    %2347 = vmatprep.subr.mxu0 0.0
    %2348 = vmatpush1.msra.mxu0 %v2343
    %2349 = vmatprep.subr.mxu0 0.0
    %2350 = vmatpush1.msra.mxu0 0.0
    %2351 = vmatprep.subr.mxu0 0.0
    %2352 = vmatpush1.msra.mxu0 0.0
    %2353 = vmatprep.subr.mxu0 0.0
    %2354 = vmatpush1.msra.mxu0 0.0
    %2355 = vmatprep.subr.mxu0 0.0
    %2356 = vmatpush1.msra.mxu0 0.0
    %2357 = vmatprep.subr.mxu0 0.0
    %2358 = vmatpush1.msra.mxu0 0.0
    %2359 = vmatprep.subr.mxu0 0.0
    %2360 = vmatpush1.msra.mxu0 0.0
    %2361 = vmatprep.subr.mxu0 0.0
    %2362 = vmatpush1.msra.mxu0 0.0
    %2363 = vmatprep.subr.mxu0 0.0
    %2364 = vmatpush1.msra.mxu0 0.0
    %2365 = vmatprep.subr.mxu0 0.0
    %2366 = vmatpush1.msra.mxu0 0.0
    %2367 = vmatprep.subr.mxu0 0.0
    %2368 = vmatpush1.msra.mxu0 0.0
    %2369 = vmatprep.subr.mxu0 0.0
    %2370 = vmatpush1.msra.mxu0 0.0
    %2371 = vmatprep.subr.mxu0 0.0
    %2372 = vmatpush1.msra.mxu0 0.0
    %2373 = vmatprep.subr.mxu0 0.0
    %2374 = vmatpush1.msra.mxu0 0.0
    %2375 = vmatprep.subr.mxu0 0.0
    %2376 = vmatpush1.msra.mxu0 0.0
    %2377 = vmatprep.subr.mxu0 0.0
    %2378 = vmatpush1.msra.mxu0 0.0
    %2379 = vmatprep.subr.mxu0 0.0
    %2380 = vmatpush1.msra.mxu0 0.0
    %2381 = vmatprep.subr.mxu0 0.0
    %2382 = vmatpush1.msra.mxu0 0.0
    %2383 = vmatprep.subr.mxu0 0.0
    %2384 = vmatpush1.msra.mxu0 0.0
    %2385 = vmatprep.subr.mxu0 0.0
    %2386 = vmatpush1.msra.mxu0 0.0
    %2387 = vmatprep.subr.mxu0 0.0
    %2388 = vmatpush1.msra.mxu0 0.0
    %2389 = vmatprep.subr.mxu0 0.0
    %2390 = vmatpush1.msra.mxu0 0.0
    %2391 = vmatprep.subr.mxu0 0.0
    %2392 = vmatpush1.msra.mxu0 0.0
    %2393 = vmatprep.subr.mxu0 0.0
    %2394 = vmatpush1.msra.mxu0 0.0
    %2395 = vmatprep.subr.mxu0 0.0
    %2396 = vmatpush1.msra.mxu0 0.0
    %2397 = vmatprep.subr.mxu0 0.0
    %2398 = vmatpush1.msra.mxu0 0.0
    %2399 = vmatprep.subr.mxu0 0.0
    %2400 = vmatpush1.msra.mxu0 0.0
    %2401 = vmatprep.subr.mxu0 0.0
    %2402 = vmatpush1.msra.mxu0 0.0
    %2403 = vmatprep.subr.mxu0 0.0
    %2404 = vmatpush1.msra.mxu0 0.0
    %2405 = vmatprep.subr.mxu0 0.0
    %2406 = vmatpush1.msra.mxu0 0.0
    %2407 = vmatprep.subr.mxu0 0.0
    %2408 = vmatpush1.msra.mxu0 0.0
    %2409 = vmatprep.mubr.f32.mxu0 0.0
    %2410 = vmatmul.mubr.f32.gmra.mrb[0].mxu0 %v2340
    %v2411 = vpop.f32.mrb[0].mxu0
    %v2412 = vadd.f32 0.0, %v2411
    %v2413 = vpop.f32.mrb[0].mxu0
    %2414 = vdwg.mxu0
    %v2415 = vadd.f32 %v2333, %v2412
    %vm2416 = vcmask 123904
    %v2417 = vsel %vm2416, %v2415, -inf
    %2418 = vmax.xlane.f32.xlu0 %v2417
    %v2419 = vpop.xlane.xlu0 %2418
    %v2420 = vsub.f32 %v2415, %v2419
    %v2421 = vmul.f32 %v2420, 1.442695
    %v2422 = vpow.pop %v2421
    %v2423 = vsel %vm2416, %v2422, 0.0
    %2424 = vadd.xlane.f32.xlu0 %v2423
    %v2425 = vpop.xlane.xlu0 %2424
    %v2426 = vrcp.pop %v2425
    %v2427 = vmul.f32 %v2422, %v2426
    %vm2428 = vcmask 255104
    %v2429 = vsel %vm2428, %v2415, -inf
    %2430 = vmax.xlane.f32.xlu0 %v2429
    %v2431 = vpop.xlane.xlu0 %2430
    %v2432 = vsub.f32 %v2415, %v2431
    %v2433 = vmul.f32 %v2432, 1.442695
    %v2434 = vpow.pop %v2433
    %2436 = vrot.lane.b32.xlu0 %v2434, 112
    %v2437 = vpop.permute.xlu0 %2436
    %v2439 = vsel %vm2416, %v2437, 0.0
    %2440 = vadd.xlane.f32.xlu0 %v2439
    %v2441 = vpop.xlane.xlu0 %2440
    %v2442 = vrcp.pop %v2441
    %v2443 = vmul.f32 %v2434, %v2442
    %vm2444 = vcmask 386304
    %v2445 = vsel %vm2444, %v2415, -inf
    %2446 = vmax.xlane.f32.xlu0 %v2445
    %v2447 = vpop.xlane.xlu0 %2446
    %v2448 = vsub.f32 %v2415, %v2447
    %v2449 = vmul.f32 %v2448, 1.442695
    %v2450 = vpow.pop %v2449
    %2452 = vrot.lane.b32.xlu0 %v2450, 96
    %v2453 = vpop.permute.xlu0 %2452
    %v2455 = vsel %vm2416, %v2453, 0.0
    %2456 = vadd.xlane.f32.xlu0 %v2455
    %v2457 = vpop.xlane.xlu0 %2456
    %v2458 = vrcp.pop %v2457
    %v2459 = vmul.f32 %v2450, %v2458
    %vm2460 = vcmask 517504
    %v2461 = vsel %vm2460, %v2415, -inf
    %2462 = vmax.xlane.f32.xlu0 %v2461
    %v2463 = vpop.xlane.xlu0 %2462
    %v2464 = vsub.f32 %v2415, %v2463
    %v2465 = vmul.f32 %v2464, 1.442695
    %v2466 = vpow.pop %v2465
    %2468 = vrot.lane.b32.xlu0 %v2466, 80
    %v2469 = vpop.permute.xlu0 %2468
    %v2471 = vsel %vm2416, %v2469, 0.0
    %2472 = vadd.xlane.f32.xlu0 %v2471
    %v2473 = vpop.xlane.xlu0 %2472
    %v2474 = vrcp.pop %v2473
    %v2475 = vmul.f32 %v2466, %v2474
    %vm2476 = vcmask 130048
    %v2477 = vsel %vm2476, %v2427, %v2443
    %vm2478 = vcmask 261120
    %v2479 = vsel %vm2478, %v2477, %v2459
    %vm2480 = vcmask 392192
    %v2481 = vsel %vm2480, %v2479, %v2475
    %vm2482 = vcmask 517120
    %2483 = vst.msk [vmem:[%s9] sm:$0x3] %vm2482, %v2481
    // Predicated region
    $region38: #{conv_attention_forward.2} parent=1 // pred_check
      _
    $region39: #{conv_attention_forward.2} parent=1 // pred_check_branch
      %2485 = sbr.rel (0) target = $region41
    $region40: #{conv_attention_forward.2} parent=1 // pred_region
      _
    $region41: #{conv_attention_forward.2} parent=1 // pred_fallthru
      _
    // Predicated region
    $region42: #{conv_attention_forward.2} parent=1 // pred_check
      _
    $region43: #{conv_attention_forward.2} parent=1 // pred_check_branch
      %2487 = sbr.rel (0) target = $region45
    $region44: #{conv_attention_forward.2} parent=1 // pred_region
      _
    $region45: #{conv_attention_forward.2} parent=1 // pred_fallthru
      _

</llo_original>
